<compile_context>
chip_gen: v6e
topology: v6e:2x2x1
jax: 0.10.0
libtpu: 0.0.40
codegen_flags: <defaults>
</compile_context>

<pallas_src>
import math
import jax
import jax.numpy as jnp
from jax.experimental import pallas as pl
from jax.experimental.pallas import tpu as pltpu


# ----------------------------- Pallas kernel -----------------------------
def _make_mha_kernel(h, d_k, d_v, d_model, eps=1e-5):
    def kernel(q_ref, k_ref, v_ref,
               wq_ref, bq_ref, wk_ref, bk_ref, wv_ref, bv_ref,
               wo_ref, bo_ref, gamma_ref, beta_ref, o_ref):
        bb, nq, _ = q_ref.shape
        nk = k_ref.shape[1]

        x_q = q_ref[...].astype(jnp.float32)                     # residual path (f32)

        # ---- Q/K/V projections: one wide 2-D MXU matmul each (bf16 in, f32 acc) ----------
        q2 = q_ref[...].astype(jnp.bfloat16).reshape(bb * nq, d_model)
        k2 = k_ref[...].astype(jnp.bfloat16).reshape(bb * nk, d_model)
        v2 = v_ref[...].astype(jnp.bfloat16).reshape(bb * nk, d_model)

        qh = jnp.dot(q2, wq_ref[...], preferred_element_type=jnp.float32) + bq_ref[...]
        kh = jnp.dot(k2, wk_ref[...], preferred_element_type=jnp.float32) + bk_ref[...]
        vh = jnp.dot(v2, wv_ref[...], preferred_element_type=jnp.float32) + bv_ref[...]

        qh = qh.reshape(bb, nq, h * d_k)
        kh = kh.reshape(bb, nk, h * d_k)
        vh = vh.reshape(bb, nk, h * d_v)

        # ---- split heads (static lane slices) and fold (head, batch) into one dim G ------
        q_hd = jnp.concatenate([qh[:, :, t * d_k:(t + 1) * d_k] for t in range(h)], axis=0)
        k_hd = jnp.concatenate([kh[:, :, t * d_k:(t + 1) * d_k] for t in range(h)], axis=0)
        v_hd = jnp.concatenate([vh[:, :, t * d_v:(t + 1) * d_v] for t in range(h)], axis=0)
        # shapes: (G=h*bb, nq, d_k) / (G, nk, d_k) / (G, nk, d_v)

        # ---- scaled dot-product attention over all (head, batch) pairs at once -----------
        # (1/sqrt(d_k) folded into wq/bq at pack time; score/AV kept in f32: d_k, d_v are
        #  tiny so the extra MXU passes are negligible and we avoid re-casting f32 to bf16.)
        s = jnp.einsum('gqd,gkd->gqk', q_hd, k_hd, preferred_element_type=jnp.float32)
        s = s - jnp.max(s, axis=-1, keepdims=True)
        p = jnp.exp(s)
        p = p * pl.reciprocal(jnp.sum(p, axis=-1, keepdims=True), approx=True)
        # TODO(synk): attention_mask / attention_weights / attention dropout omitted
        #             (eval-mode dropout; mask & weights default to None in the module).
        # TODO(synk): for long nk switch to flash-style KV tiling (kv grid axis last,
        #             'arbitrary', online softmax with m/l/acc scratch) instead of
        #             materializing the (G, nq, nk) score tensor in VMEM.

        av = jnp.einsum('gqk,gkd->gqd', p, v_hd, preferred_element_type=jnp.float32)

        # ---- output projection fused with head reduction ---------------------------------
        # Gather heads back into the lane dim -> one (bb*nq, h*d_v) x (h*d_v, d_model)
        # matmul; the per-head sum becomes MXU accumulation over the h*d_v contraction.
        av_w = jnp.concatenate([av[t * bb:(t + 1) * bb] for t in range(h)], axis=-1)
        av2 = av_w.reshape(bb * nq, h * d_v).astype(jnp.bfloat16)
        out = jnp.dot(av2, wo_ref[...], preferred_element_type=jnp.float32) + bo_ref[...]
        out = out.reshape(bb, nq, d_model)

        # ---- residual + LayerNorm ---------------------------------------------------------
        res = x_q + out
        mean = jnp.mean(res, axis=-1, keepdims=True)
        diff = res - mean
        var = jnp.mean(diff * diff, axis=-1, keepdims=True)
        y = diff * jax.lax.rsqrt(var + eps)
        y = y * gamma_ref[...][None] + beta_ref[...][None]
        o_ref[...] = y.astype(o_ref.dtype)

    return kernel


# ----------------------------- parameter packing -----------------------------
def pack_params(params, *, d_k):
    """One-time repack: fold 1/sqrt(d_k) into Wq/bq and pre-cast weights to bf16.
       Weights keep their natural (fan_in, fan_out) layout so the kernel can do wide
       2-D matmuls; biases / LayerNorm params stay f32 (added after f32 accumulation)."""
    scale = 1.0 / math.sqrt(d_k)
    return {
        "wq": (params["wq"] * scale).astype(jnp.bfloat16),   # (d_model, h*d_k)
        "bq": params["bq"] * scale,                           # (1, h*d_k) f32
        "wk": params["wk"].astype(jnp.bfloat16),              # (d_model, h*d_k)
        "bk": params["bk"],
        "wv": params["wv"].astype(jnp.bfloat16),              # (d_model, h*d_v)
        "bv": params["bv"],
        "wo": params["wo"].astype(jnp.bfloat16),              # (h*d_v, d_model)
        "bo": params["bo"],
        "gamma": params["gamma"],
        "beta": params["beta"],
    }


# ----------------------------- VMEM budgeting -----------------------------
def _vmem_bytes_per_step(bb, nq, nk, d_model, h, d_k, d_v):
    f32, bf16 = 4, 2
    G = bb * h
    # double-buffered sequence blocks (q, k, v in; out)
    io = 2 * f32 * (2 * bb * nq * d_model + 2 * bb * nk * d_model)
    # weights / biases / LN params (also double-buffered by default)
    w = 2 * (bf16 * (2 * d_model * h * d_k + d_model * h * d_v + h * d_v * d_model)
             + f32 * (2 * h * d_k + h * d_v + 4 * d_model))
    # dominant f32 in-kernel intermediates (score tensor dominates for long sequences)
    inter = f32 * (2 * G * nq * nk
                   + bb * nq * h * d_k + bb * nk * h * d_k + bb * nk * h * d_v
                   + 2 * G * nq * d_v
                   + 3 * bb * nq * d_model)
    return io + w + inter


# ----------------------------- wrapper -----------------------------
def multi_head_attention(queries, keys, values, packed, *, h, d_k, d_v, d_model,
                         block_b=None):
    """queries (B, nq, d_model), keys/values (B, nk, d_model) -> (B, nq, d_model)."""
    B, nq, _ = queries.shape
    nk = keys.shape[1]

    # --- choose block_b: whole batch on single-TC chips, >= 2 grid steps on v7x ----------
    if block_b is None:
        try:
            kind = jax.devices()[0].device_kind.lower()
        except Exception:
            kind = ""
        # v7x has 2 TensorCores/chip: the "parallel" batch axis needs >= 2 steps to use both.
        # v5e/v6e are single-TC: extra grid steps only add ~0.35 us each, so take the batch.
        block_b = max(1, B // 2) if ("v7" in kind and B >= 2) else B

    divisors = [d for d in range(1, B + 1) if B % d == 0]
    block_b = max(d for d in divisors if d <= max(1, block_b))

    # --- VMEM budget: keep the per-step working set spill-free on the smallest target ----
    # (v7x: 64 MiB physical / 32 MiB scoped default; v5e/v6e: 128 MiB physical).
    budget = 28 * 1024 * 1024
    while block_b > 1 and _vmem_bytes_per_step(block_b, nq, nk, d_model, h, d_k, d_v) > budget:
        block_b = max(d for d in divisors if d < block_b)
    n_blocks = B // block_b

    est = _vmem_bytes_per_step(block_b, nq, nk, d_model, h, d_k, d_v)
    vmem_limit = None
    if est > 12 * 1024 * 1024:
        # Raise the scoped-VMEM limit above the small defaults (16 MiB on v5e, 32 MiB on
        # v6e/v7x) when the working set needs it; stay under v7x's 64 MiB physical VMEM.
        vmem_limit = int(min(max(2 * est, 32 * 1024 * 1024), 60 * 1024 * 1024))

    kernel = _make_mha_kernel(h, d_k, d_v, d_model)

    # NOTE: last block dims equal the full d_model (no external pad / post-slice HBM round
    # trips).  If d_model is not a multiple of 128 the output store is lane-masked; for best
    # bandwidth use 128-multiple d_model or keep activations pre-padded across layers.
    def seq_spec(n):
        return pl.BlockSpec((block_b, n, d_model), lambda i: (i, 0, 0))

    def const_spec(shape):
        # Constant index map -> fetched once.  TODO(synk): pipeline_mode=pl.Buffered(1) on
        # these would halve the weight VMEM reservation for very large d_model.
        return pl.BlockSpec(shape, lambda i: (0,) * len(shape))

    hk, hv = h * d_k, h * d_v
    out = pl.pallas_call(
        kernel,
        out_shape=jax.ShapeDtypeStruct((B, nq, d_model), queries.dtype),
        grid_spec=pltpu.PrefetchScalarGridSpec(
            num_scalar_prefetch=0,
            grid=(n_blocks,),
            in_specs=[
                seq_spec(nq), seq_spec(nk), seq_spec(nk),
                const_spec((d_model, hk)), const_spec((1, hk)),
                const_spec((d_model, hk)), const_spec((1, hk)),
                const_spec((d_model, hv)), const_spec((1, hv)),
                const_spec((hv, d_model)), const_spec((1, d_model)),
                const_spec((1, d_model)), const_spec((1, d_model)),
            ],
            out_specs=pl.BlockSpec((block_b, nq, d_model), lambda i: (i, 0, 0)),
        ),
        compiler_params=pltpu.CompilerParams(
            dimension_semantics=("parallel",),
            vmem_limit_bytes=vmem_limit),
    )(queries, keys, values,
      packed["wq"], packed["bq"], packed["wk"], packed["bk"],
      packed["wv"], packed["bv"], packed["wo"], packed["bo"],
      packed["gamma"], packed["beta"])
    return out


# ----------------------------- parameter init -----------------------------
def xavier_uniform(key, fan_in, fan_out, dtype=jnp.float32):
    # matches torch.nn.init.xavier_uniform_ on a (fan_out, fan_in) weight;
    # we store the transpose (fan_in, fan_out).
    limit = math.sqrt(6.0 / (fan_in + fan_out))
    return jax.random.uniform(key, (fan_in, fan_out), dtype, minval=-limit, maxval=limit)


def init_params(key, d_model, d_k, d_v, h):
    ks = jax.random.split(key, 4)
    return {
        "wq": xavier_uniform(ks[0], d_model, h * d_k),
        "bq": jnp.zeros((1, h * d_k), jnp.float32),
        "wk": xavier_uniform(ks[1], d_model, h * d_k),
        "bk": jnp.zeros((1, h * d_k), jnp.float32),
        "wv": xavier_uniform(ks[2], d_model, h * d_v),
        "bv": jnp.zeros((1, h * d_v), jnp.float32),
        "wo": xavier_uniform(ks[3], h * d_v, d_model),
        "bo": jnp.zeros((1, d_model), jnp.float32),
        "gamma": jnp.ones((1, d_model), jnp.float32),
        "beta": jnp.zeros((1, d_model), jnp.float32),
    }


# ----------------------------- pure-JAX reference (f32) -----------------------------
def reference(queries, keys, values, p, *, h, d_k, d_v):
    B, nq, d_model = queries.shape
    nk = keys.shape[1]
    q = (queries @ p["wq"] + p["bq"]).reshape(B, nq, h, d_k).transpose(0, 2, 1, 3)
    k = (keys @ p["wk"] + p["bk"]).reshape(B, nk, h, d_k).transpose(0, 2, 3, 1)
    v = (values @ p["wv"] + p["bv"]).reshape(B, nk, h, d_v).transpose(0, 2, 1, 3)
    att = jax.nn.softmax(q @ k / math.sqrt(d_k), axis=-1)
    out = (att @ v).transpose(0, 2, 1, 3).reshape(B, nq, h * d_v)
    out = out @ p["wo"] + p["bo"]
    res = queries + out
    mean = res.mean(-1, keepdims=True)
    var = ((res - mean) ** 2).mean(-1, keepdims=True)
    return (res - mean) / jnp.sqrt(var + 1e-5) * p["gamma"] + p["beta"]


# ----------------------------- main -----------------------------
if __name__ == "__main__":
    d_model, d_k, d_v, h = 32, 8, 8, 4
    B, nq, nk = 2, 8, 8

    key = jax.random.PRNGKey(0)
    kq, kk, kv, kp = jax.random.split(key, 4)
    queries = jax.random.normal(kq, (B, nq, d_model), jnp.float32)
    keys = jax.random.normal(kk, (B, nk, d_model), jnp.float32)
    values = jax.random.normal(kv, (B, nk, d_model), jnp.float32)

    params = init_params(kp, d_model, d_k, d_v, h)
    packed = pack_params(params, d_k=d_k)

    out = multi_head_attention(queries, keys, values, packed,
                               h=h, d_k=d_k, d_v=d_v, d_model=d_model)
    out = jax.block_until_ready(out)

    ref = reference(queries, keys, values, params, h=h, d_k=d_k, d_v=d_v)
    assert out.shape == (B, nq, d_model)
    # bf16 weights/activations on the projection MXU passes (f32 accumulation) + approx
    # softmax reciprocal; score/AV matmuls stay f32, so tolerance is tighter than before.
    assert jnp.allclose(out, ref, atol=3e-2, rtol=3e-2), \
        float(jnp.max(jnp.abs(out - ref)))

    print("KERNEL_OK")
</pallas_src>

<mosaic_0001>
module attributes {stable_mosaic.version = 11 : i64} {
  func.func @kernel(%arg0: i32, %arg1: memref<2x8x32xf32, #tpu.memory_space<vmem>>, %arg2: memref<2x8x32xf32, #tpu.memory_space<vmem>>, %arg3: memref<2x8x32xf32, #tpu.memory_space<vmem>>, %arg4: memref<32x32xbf16, #tpu.memory_space<vmem>>, %arg5: memref<1x32xf32, #tpu.memory_space<vmem>>, %arg6: memref<32x32xbf16, #tpu.memory_space<vmem>>, %arg7: memref<1x32xf32, #tpu.memory_space<vmem>>, %arg8: memref<32x32xbf16, #tpu.memory_space<vmem>>, %arg9: memref<1x32xf32, #tpu.memory_space<vmem>>, %arg10: memref<32x32xbf16, #tpu.memory_space<vmem>>, %arg11: memref<1x32xf32, #tpu.memory_space<vmem>>, %arg12: memref<1x32xf32, #tpu.memory_space<vmem>>, %arg13: memref<1x32xf32, #tpu.memory_space<vmem>>, %arg14: memref<2x8x32xf32, #tpu.memory_space<vmem>>) attributes {dimension_semantics = [#tpu.dimension_semantics<parallel>], iteration_bounds = array<i64: 1>, scalar_prefetch = 0 : i64, scratch_operands = 0 : i64, tpu.core_type = #tpu.core_type<tc>, window_params = [{transform_indices = @transform_0, window_bounds = array<i64: 2, 8, 32>}, {transform_indices = @transform_1, window_bounds = array<i64: 2, 8, 32>}, {transform_indices = @transform_2, window_bounds = array<i64: 2, 8, 32>}, {pipeline_mode = #tpu.pipeline_mode<synchronous>, transform_indices = @transform_3, window_bounds = array<i64: 32, 32>}, {pipeline_mode = #tpu.pipeline_mode<synchronous>, transform_indices = @transform_4, window_bounds = array<i64: 1, 32>}, {pipeline_mode = #tpu.pipeline_mode<synchronous>, transform_indices = @transform_5, window_bounds = array<i64: 32, 32>}, {pipeline_mode = #tpu.pipeline_mode<synchronous>, transform_indices = @transform_6, window_bounds = array<i64: 1, 32>}, {pipeline_mode = #tpu.pipeline_mode<synchronous>, transform_indices = @transform_7, window_bounds = array<i64: 32, 32>}, {pipeline_mode = #tpu.pipeline_mode<synchronous>, transform_indices = @transform_8, window_bounds = array<i64: 1, 32>}, {pipeline_mode = #tpu.pipeline_mode<synchronous>, transform_indices = @transform_9, window_bounds = array<i64: 32, 32>}, {pipeline_mode = #tpu.pipeline_mode<synchronous>, transform_indices = @transform_10, window_bounds = array<i64: 1, 32>}, {pipeline_mode = #tpu.pipeline_mode<synchronous>, transform_indices = @transform_11, window_bounds = array<i64: 1, 32>}, {pipeline_mode = #tpu.pipeline_mode<synchronous>, transform_indices = @transform_12, window_bounds = array<i64: 1, 32>}, {transform_indices = @transform_13, window_bounds = array<i64: 2, 8, 32>}]} {
    %c0 = arith.constant 0 : index
    %c0_0 = arith.constant 0 : index
    %c0_1 = arith.constant 0 : index
    %0 = vector.load %arg1[%c0, %c0_0, %c0_1] : memref<2x8x32xf32, #tpu.memory_space<vmem>>, vector<2x8x32xf32>
    %c0_2 = arith.constant 0 : index
    %c0_3 = arith.constant 0 : index
    %c0_4 = arith.constant 0 : index
    %1 = vector.load %arg1[%c0_2, %c0_3, %c0_4] : memref<2x8x32xf32, #tpu.memory_space<vmem>>, vector<2x8x32xf32>
    %2 = arith.truncf %1 : vector<2x8x32xf32> to vector<2x8x32xbf16>
    %3 = vector.shape_cast %2 : vector<2x8x32xbf16> to vector<16x32xbf16>
    %c0_5 = arith.constant 0 : index
    %c0_6 = arith.constant 0 : index
    %c0_7 = arith.constant 0 : index
    %4 = vector.load %arg2[%c0_5, %c0_6, %c0_7] : memref<2x8x32xf32, #tpu.memory_space<vmem>>, vector<2x8x32xf32>
    %5 = arith.truncf %4 : vector<2x8x32xf32> to vector<2x8x32xbf16>
    %6 = vector.shape_cast %5 : vector<2x8x32xbf16> to vector<16x32xbf16>
    %c0_8 = arith.constant 0 : index
    %c0_9 = arith.constant 0 : index
    %c0_10 = arith.constant 0 : index
    %7 = vector.load %arg3[%c0_8, %c0_9, %c0_10] : memref<2x8x32xf32, #tpu.memory_space<vmem>>, vector<2x8x32xf32>
    %8 = arith.truncf %7 : vector<2x8x32xf32> to vector<2x8x32xbf16>
    %9 = vector.shape_cast %8 : vector<2x8x32xbf16> to vector<16x32xbf16>
    %c0_11 = arith.constant 0 : index
    %c0_12 = arith.constant 0 : index
    %10 = vector.load %arg4[%c0_11, %c0_12] : memref<32x32xbf16, #tpu.memory_space<vmem>>, vector<32x32xbf16>
    %cst = arith.constant dense<0.000000e+00> : vector<16x32xf32>
    %11 = tpu.matmul %3, %10, %cst {dimension_numbers = #tpu.dot_dimension_numbers<[1], [0], [0], [1], [0, 0, 1, 1], [], []>} : vector<16x32xbf16>, vector<32x32xbf16>, vector<16x32xf32> -> vector<16x32xf32>
    %c0_13 = arith.constant 0 : index
    %c0_14 = arith.constant 0 : index
    %12 = vector.load %arg5[%c0_13, %c0_14] : memref<1x32xf32, #tpu.memory_space<vmem>>, vector<1x32xf32>
    %13 = vector.broadcast %12 : vector<1x32xf32> to vector<16x32xf32>
    %14 = arith.addf %11, %13 : vector<16x32xf32>
    %c0_15 = arith.constant 0 : index
    %c0_16 = arith.constant 0 : index
    %15 = vector.load %arg6[%c0_15, %c0_16] : memref<32x32xbf16, #tpu.memory_space<vmem>>, vector<32x32xbf16>
    %cst_17 = arith.constant dense<0.000000e+00> : vector<16x32xf32>
    %16 = tpu.matmul %6, %15, %cst_17 {dimension_numbers = #tpu.dot_dimension_numbers<[1], [0], [0], [1], [0, 0, 1, 1], [], []>} : vector<16x32xbf16>, vector<32x32xbf16>, vector<16x32xf32> -> vector<16x32xf32>
    %c0_18 = arith.constant 0 : index
    %c0_19 = arith.constant 0 : index
    %17 = vector.load %arg7[%c0_18, %c0_19] : memref<1x32xf32, #tpu.memory_space<vmem>>, vector<1x32xf32>
    %18 = vector.broadcast %17 : vector<1x32xf32> to vector<16x32xf32>
    %19 = arith.addf %16, %18 : vector<16x32xf32>
    %c0_20 = arith.constant 0 : index
    %c0_21 = arith.constant 0 : index
    %20 = vector.load %arg8[%c0_20, %c0_21] : memref<32x32xbf16, #tpu.memory_space<vmem>>, vector<32x32xbf16>
    %cst_22 = arith.constant dense<0.000000e+00> : vector<16x32xf32>
    %21 = tpu.matmul %9, %20, %cst_22 {dimension_numbers = #tpu.dot_dimension_numbers<[1], [0], [0], [1], [0, 0, 1, 1], [], []>} : vector<16x32xbf16>, vector<32x32xbf16>, vector<16x32xf32> -> vector<16x32xf32>
    %c0_23 = arith.constant 0 : index
    %c0_24 = arith.constant 0 : index
    %22 = vector.load %arg9[%c0_23, %c0_24] : memref<1x32xf32, #tpu.memory_space<vmem>>, vector<1x32xf32>
    %23 = vector.broadcast %22 : vector<1x32xf32> to vector<16x32xf32>
    %24 = arith.addf %21, %23 : vector<16x32xf32>
    %25 = vector.shape_cast %14 : vector<16x32xf32> to vector<2x8x32xf32>
    %26 = vector.shape_cast %19 : vector<16x32xf32> to vector<2x8x32xf32>
    %27 = vector.shape_cast %24 : vector<16x32xf32> to vector<2x8x32xf32>
    %28 = vector.extract_strided_slice %25 {offsets = [0, 0, 0], sizes = [2, 8, 8], strides = [1, 1, 1]} : vector<2x8x32xf32> to vector<2x8x8xf32>
    %29 = vector.extract_strided_slice %25 {offsets = [0, 0, 8], sizes = [2, 8, 8], strides = [1, 1, 1]} : vector<2x8x32xf32> to vector<2x8x8xf32>
    %30 = vector.extract_strided_slice %25 {offsets = [0, 0, 16], sizes = [2, 8, 8], strides = [1, 1, 1]} : vector<2x8x32xf32> to vector<2x8x8xf32>
    %31 = vector.extract_strided_slice %25 {offsets = [0, 0, 24], sizes = [2, 8, 8], strides = [1, 1, 1]} : vector<2x8x32xf32> to vector<2x8x8xf32>
    %32 = tpu.concatenate %28, %29, %30, %31 in 0 : vector<2x8x8xf32>, vector<2x8x8xf32>, vector<2x8x8xf32>, vector<2x8x8xf32> -> vector<8x8x8xf32>
    %33 = vector.extract_strided_slice %26 {offsets = [0, 0, 0], sizes = [2, 8, 8], strides = [1, 1, 1]} : vector<2x8x32xf32> to vector<2x8x8xf32>
    %34 = vector.extract_strided_slice %26 {offsets = [0, 0, 8], sizes = [2, 8, 8], strides = [1, 1, 1]} : vector<2x8x32xf32> to vector<2x8x8xf32>
    %35 = vector.extract_strided_slice %26 {offsets = [0, 0, 16], sizes = [2, 8, 8], strides = [1, 1, 1]} : vector<2x8x32xf32> to vector<2x8x8xf32>
    %36 = vector.extract_strided_slice %26 {offsets = [0, 0, 24], sizes = [2, 8, 8], strides = [1, 1, 1]} : vector<2x8x32xf32> to vector<2x8x8xf32>
    %37 = tpu.concatenate %33, %34, %35, %36 in 0 : vector<2x8x8xf32>, vector<2x8x8xf32>, vector<2x8x8xf32>, vector<2x8x8xf32> -> vector<8x8x8xf32>
    %38 = vector.extract_strided_slice %27 {offsets = [0, 0, 0], sizes = [2, 8, 8], strides = [1, 1, 1]} : vector<2x8x32xf32> to vector<2x8x8xf32>
    %39 = vector.extract_strided_slice %27 {offsets = [0, 0, 8], sizes = [2, 8, 8], strides = [1, 1, 1]} : vector<2x8x32xf32> to vector<2x8x8xf32>
    %40 = vector.extract_strided_slice %27 {offsets = [0, 0, 16], sizes = [2, 8, 8], strides = [1, 1, 1]} : vector<2x8x32xf32> to vector<2x8x8xf32>
    %41 = vector.extract_strided_slice %27 {offsets = [0, 0, 24], sizes = [2, 8, 8], strides = [1, 1, 1]} : vector<2x8x32xf32> to vector<2x8x8xf32>
    %42 = tpu.concatenate %38, %39, %40, %41 in 0 : vector<2x8x8xf32>, vector<2x8x8xf32>, vector<2x8x8xf32>, vector<2x8x8xf32> -> vector<8x8x8xf32>
    "tpu.trace_start"() <{level = 10 : i32, message = "gqd,gkd->gqk"}> : () -> ()
    %cst_25 = arith.constant dense<0.000000e+00> : vector<8x8x8xf32>
    %43 = tpu.matmul %32, %37, %cst_25 {dimension_numbers = #tpu.dot_dimension_numbers<[2], [2], [1], [1], [0, 0, 0, 1, 1, 1], [0], [0]>} : vector<8x8x8xf32>, vector<8x8x8xf32>, vector<8x8x8xf32> -> vector<8x8x8xf32>
    "tpu.trace_stop"() : () -> ()
    %cst_26 = arith.constant dense<0xFF800000> : vector<8x8xf32>
    %44 = vector.multi_reduction <maximumf>, %43, %cst_26 [2] : vector<8x8x8xf32> to vector<8x8xf32>
    %45 = vector.shape_cast %44 : vector<8x8xf32> to vector<8x8x1xf32>
    %46 = vector.broadcast %45 : vector<8x8x1xf32> to vector<8x8x8xf32>
    %47 = arith.subf %43, %46 : vector<8x8x8xf32>
    %48 = math.exp %47 : vector<8x8x8xf32>
    %cst_27 = arith.constant dense<0.000000e+00> : vector<8x8xf32>
    %49 = vector.multi_reduction <add>, %48, %cst_27 [2] : vector<8x8x8xf32> to vector<8x8xf32>
    %50 = vector.shape_cast %49 : vector<8x8xf32> to vector<8x8x1xf32>
    %51 = tpu.reciprocal %50 {approx = true} : vector<8x8x1xf32> -> vector<8x8x1xf32>
    %52 = vector.broadcast %51 : vector<8x8x1xf32> to vector<8x8x8xf32>
    %53 = arith.mulf %48, %52 : vector<8x8x8xf32>
    "tpu.trace_start"() <{level = 10 : i32, message = "gqk,gkd->gqd"}> : () -> ()
    %cst_28 = arith.constant dense<0.000000e+00> : vector<8x8x8xf32>
    %54 = tpu.matmul %53, %42, %cst_28 {dimension_numbers = #tpu.dot_dimension_numbers<[2], [1], [1], [2], [0, 0, 0, 1, 1, 2], [0], [0]>} : vector<8x8x8xf32>, vector<8x8x8xf32>, vector<8x8x8xf32> -> vector<8x8x8xf32>
    "tpu.trace_stop"() : () -> ()
    %55 = vector.extract_strided_slice %54 {offsets = [0, 0, 0], sizes = [2, 8, 8], strides = [1, 1, 1]} : vector<8x8x8xf32> to vector<2x8x8xf32>
    %56 = vector.extract_strided_slice %54 {offsets = [2, 0, 0], sizes = [2, 8, 8], strides = [1, 1, 1]} : vector<8x8x8xf32> to vector<2x8x8xf32>
    %57 = vector.extract_strided_slice %54 {offsets = [4, 0, 0], sizes = [2, 8, 8], strides = [1, 1, 1]} : vector<8x8x8xf32> to vector<2x8x8xf32>
    %58 = vector.extract_strided_slice %54 {offsets = [6, 0, 0], sizes = [2, 8, 8], strides = [1, 1, 1]} : vector<8x8x8xf32> to vector<2x8x8xf32>
    %59 = tpu.concatenate %55, %56, %57, %58 in 2 : vector<2x8x8xf32>, vector<2x8x8xf32>, vector<2x8x8xf32>, vector<2x8x8xf32> -> vector<2x8x32xf32>
    %60 = vector.shape_cast %59 : vector<2x8x32xf32> to vector<16x32xf32>
    %61 = arith.truncf %60 : vector<16x32xf32> to vector<16x32xbf16>
    %c0_29 = arith.constant 0 : index
    %c0_30 = arith.constant 0 : index
    %62 = vector.load %arg10[%c0_29, %c0_30] : memref<32x32xbf16, #tpu.memory_space<vmem>>, vector<32x32xbf16>
    %cst_31 = arith.constant dense<0.000000e+00> : vector<16x32xf32>
    %63 = tpu.matmul %61, %62, %cst_31 {dimension_numbers = #tpu.dot_dimension_numbers<[1], [0], [0], [1], [0, 0, 1, 1], [], []>} : vector<16x32xbf16>, vector<32x32xbf16>, vector<16x32xf32> -> vector<16x32xf32>
    %c0_32 = arith.constant 0 : index
    %c0_33 = arith.constant 0 : index
    %64 = vector.load %arg11[%c0_32, %c0_33] : memref<1x32xf32, #tpu.memory_space<vmem>>, vector<1x32xf32>
    %65 = vector.broadcast %64 : vector<1x32xf32> to vector<16x32xf32>
    %66 = arith.addf %63, %65 : vector<16x32xf32>
    %67 = vector.shape_cast %66 : vector<16x32xf32> to vector<2x8x32xf32>
    %68 = arith.addf %0, %67 : vector<2x8x32xf32>
    %cst_34 = arith.constant dense<0.000000e+00> : vector<2x8xf32>
    %69 = vector.multi_reduction <add>, %68, %cst_34 [2] : vector<2x8x32xf32> to vector<2x8xf32>
    %70 = vector.shape_cast %69 : vector<2x8xf32> to vector<2x8x1xf32>
    %cst_35 = arith.constant 3.200000e+01 : f32
    %71 = vector.broadcast %cst_35 : f32 to vector<2x8x1xf32>
    %72 = arith.divf %70, %71 : vector<2x8x1xf32>
    %73 = vector.broadcast %72 : vector<2x8x1xf32> to vector<2x8x32xf32>
    %74 = arith.subf %68, %73 : vector<2x8x32xf32>
    %75 = arith.mulf %74, %74 : vector<2x8x32xf32>
    %cst_36 = arith.constant dense<0.000000e+00> : vector<2x8xf32>
    %76 = vector.multi_reduction <add>, %75, %cst_36 [2] : vector<2x8x32xf32> to vector<2x8xf32>
    %77 = vector.shape_cast %76 : vector<2x8xf32> to vector<2x8x1xf32>
    %cst_37 = arith.constant 3.200000e+01 : f32
    %78 = vector.broadcast %cst_37 : f32 to vector<2x8x1xf32>
    %79 = arith.divf %77, %78 : vector<2x8x1xf32>
    %cst_38 = arith.constant 9.99999974E-6 : f32
    %80 = vector.broadcast %cst_38 : f32 to vector<2x8x1xf32>
    %81 = arith.addf %79, %80 : vector<2x8x1xf32>
    %82 = math.rsqrt %81 : vector<2x8x1xf32>
    %83 = vector.broadcast %82 : vector<2x8x1xf32> to vector<2x8x32xf32>
    %84 = arith.mulf %74, %83 : vector<2x8x32xf32>
    %c0_39 = arith.constant 0 : index
    %c0_40 = arith.constant 0 : index
    %85 = vector.load %arg12[%c0_39, %c0_40] : memref<1x32xf32, #tpu.memory_space<vmem>>, vector<1x32xf32>
    %86 = vector.shape_cast %85 : vector<1x32xf32> to vector<1x1x32xf32>
    %87 = vector.broadcast %86 : vector<1x1x32xf32> to vector<2x8x32xf32>
    %88 = arith.mulf %84, %87 : vector<2x8x32xf32>
    %c0_41 = arith.constant 0 : index
    %c0_42 = arith.constant 0 : index
    %89 = vector.load %arg13[%c0_41, %c0_42] : memref<1x32xf32, #tpu.memory_space<vmem>>, vector<1x32xf32>
    %90 = vector.shape_cast %89 : vector<1x32xf32> to vector<1x1x32xf32>
    %91 = vector.broadcast %90 : vector<1x1x32xf32> to vector<2x8x32xf32>
    %92 = arith.addf %88, %91 : vector<2x8x32xf32>
    %c0_43 = arith.constant 0 : index
    %c0_44 = arith.constant 0 : index
    %c0_45 = arith.constant 0 : index
    %93 = vector.load %arg14[%c0_43, %c0_44, %c0_45] : memref<2x8x32xf32, #tpu.memory_space<vmem>>, vector<2x8x32xf32>
    tpu.vector_store %arg14[%c0_43, %c0_44, %c0_45], %92 {strides = array<i32>} : memref<2x8x32xf32, #tpu.memory_space<vmem>>, vector<2x8x32xf32>,
    return
  }
  func.func @transform_0(%arg0: i32) -> (i32, i32, i32) {
    %c0_i32 = arith.constant 0 : i32
    %c0_i32_0 = arith.constant 0 : i32
    %c0_i32_1 = arith.constant 0 : i32
    return %arg0, %c0_i32, %c0_i32_0 : i32, i32, i32
  }
  func.func @transform_1(%arg0: i32) -> (i32, i32, i32) {
    %c0_i32 = arith.constant 0 : i32
    %c0_i32_0 = arith.constant 0 : i32
    %c0_i32_1 = arith.constant 0 : i32
    return %arg0, %c0_i32, %c0_i32_0 : i32, i32, i32
  }
  func.func @transform_2(%arg0: i32) -> (i32, i32, i32) {
    %c0_i32 = arith.constant 0 : i32
    %c0_i32_0 = arith.constant 0 : i32
    %c0_i32_1 = arith.constant 0 : i32
    return %arg0, %c0_i32, %c0_i32_0 : i32, i32, i32
  }
  func.func @transform_3(%arg0: i32) -> (i32, i32) {
    %c0_i32 = arith.constant 0 : i32
    %c0_i32_0 = arith.constant 0 : i32
    %c0_i32_1 = arith.constant 0 : i32
    return %c0_i32, %c0_i32_0 : i32, i32
  }
  func.func @transform_4(%arg0: i32) -> (i32, i32) {
    %c0_i32 = arith.constant 0 : i32
    %c0_i32_0 = arith.constant 0 : i32
    %c0_i32_1 = arith.constant 0 : i32
    return %c0_i32, %c0_i32_0 : i32, i32
  }
  func.func @transform_5(%arg0: i32) -> (i32, i32) {
    %c0_i32 = arith.constant 0 : i32
    %c0_i32_0 = arith.constant 0 : i32
    %c0_i32_1 = arith.constant 0 : i32
    return %c0_i32, %c0_i32_0 : i32, i32
  }
  func.func @transform_6(%arg0: i32) -> (i32, i32) {
    %c0_i32 = arith.constant 0 : i32
    %c0_i32_0 = arith.constant 0 : i32
    %c0_i32_1 = arith.constant 0 : i32
    return %c0_i32, %c0_i32_0 : i32, i32
  }
  func.func @transform_7(%arg0: i32) -> (i32, i32) {
    %c0_i32 = arith.constant 0 : i32
    %c0_i32_0 = arith.constant 0 : i32
    %c0_i32_1 = arith.constant 0 : i32
    return %c0_i32, %c0_i32_0 : i32, i32
  }
  func.func @transform_8(%arg0: i32) -> (i32, i32) {
    %c0_i32 = arith.constant 0 : i32
    %c0_i32_0 = arith.constant 0 : i32
    %c0_i32_1 = arith.constant 0 : i32
    return %c0_i32, %c0_i32_0 : i32, i32
  }
  func.func @transform_9(%arg0: i32) -> (i32, i32) {
    %c0_i32 = arith.constant 0 : i32
    %c0_i32_0 = arith.constant 0 : i32
    %c0_i32_1 = arith.constant 0 : i32
    return %c0_i32, %c0_i32_0 : i32, i32
  }
  func.func @transform_10(%arg0: i32) -> (i32, i32) {
    %c0_i32 = arith.constant 0 : i32
    %c0_i32_0 = arith.constant 0 : i32
    %c0_i32_1 = arith.constant 0 : i32
    return %c0_i32, %c0_i32_0 : i32, i32
  }
  func.func @transform_11(%arg0: i32) -> (i32, i32) {
    %c0_i32 = arith.constant 0 : i32
    %c0_i32_0 = arith.constant 0 : i32
    %c0_i32_1 = arith.constant 0 : i32
    return %c0_i32, %c0_i32_0 : i32, i32
  }
  func.func @transform_12(%arg0: i32) -> (i32, i32) {
    %c0_i32 = arith.constant 0 : i32
    %c0_i32_0 = arith.constant 0 : i32
    %c0_i32_1 = arith.constant 0 : i32
    return %c0_i32, %c0_i32_0 : i32, i32
  }
  func.func @transform_13(%arg0: i32) -> (i32, i32, i32) {
    %c0_i32 = arith.constant 0 : i32
    %c0_i32_0 = arith.constant 0 : i32
    %c0_i32_1 = arith.constant 0 : i32
    return %arg0, %c0_i32, %c0_i32_0 : i32, i32, i32
  }
}

</mosaic_0001>

<llo_original>
// kernel: tpu_custom_call.1
$region0: #{tpu_custom_call.1}
  #allocation0 [shape = 'u32[]', space=smem, size = 0x4, offset = 0x4, fixed_abs, tag = 'smem constant byte address 0x4 - core index']
  #allocation1 [shape = 'u32[144,128]{1,0:T(1,128)}', space=vmem, size = 0x12000, scoped, tag = 'internal scratch']
  %s0 = inlined_call_operand.hbm [shape: f32[2,8,32], index: 0, kind: input, shape index: {}]
  %s1 = inlined_call_operand.hbm [shape: f32[2,8,32], index: 1, kind: input, shape index: {}]
  %s2 = inlined_call_operand.hbm [shape: f32[2,8,32], index: 2, kind: input, shape index: {}]
  %s3 = inlined_call_operand.hbm [shape: bf16[32,32], index: 3, kind: input, shape index: {}]
  %s4 = inlined_call_operand.hbm [shape: f32[1,32], index: 4, kind: input, shape index: {}]
  %s5 = inlined_call_operand.hbm [shape: bf16[32,32], index: 5, kind: input, shape index: {}]
  %s6 = inlined_call_operand.hbm [shape: f32[1,32], index: 6, kind: input, shape index: {}]
  %s7 = inlined_call_operand.hbm [shape: bf16[32,32], index: 7, kind: input, shape index: {}]
  %s8 = inlined_call_operand.hbm [shape: f32[1,32], index: 8, kind: input, shape index: {}]
  %s9 = inlined_call_operand.vmem [shape: bf16[32,32], index: 9, kind: input, shape index: {}]
  %s10 = inlined_call_operand.vmem [shape: f32[1,32], index: 10, kind: input, shape index: {}]
  %s11 = inlined_call_operand.vmem [shape: f32[1,32], index: 11, kind: input, shape index: {}]
  %s12 = inlined_call_operand.vmem [shape: f32[1,32], index: 12, kind: input, shape index: {}]
  %s13 = inlined_call_operand.hbm [shape: f32[2,8,32], index: 13, kind: output, shape index: {}]
  %s14 = sld [smem:[#allocation0]]
  $region98: #{tpu_custom_call.1} parent=0
    _
  %s16 = ssub.s32 1, %s14
  %s17 = scalar_select 0, %s16, %s14
  $region1: #{tpu_custom_call.1} parent=0
    #allocation2 [shape = 'u8[8192]{0}', space=vmem, size = 0x2000, scoped, tag = 'input window, operand 0, single buffered']
    #allocation3 [shape = 's32[1]{0}', space=sflag, size = 0x4, scoped, tag = 'scoped memory for tpu_custom_call.1']
    #allocation4 [shape = 's32[1]{0}', space=sflag, size = 0x4, scoped, tag = 'scoped memory for tpu_custom_call.1']
    #allocation5 [shape = 'u8[8192]{0}', space=vmem, size = 0x2000, scoped, tag = 'input window, operand 1, single buffered']
    #allocation6 [shape = 's32[1]{0}', space=sflag, size = 0x4, scoped, tag = 'scoped memory for tpu_custom_call.1']
    #allocation7 [shape = 'u8[8192]{0}', space=vmem, size = 0x2000, scoped, tag = 'input window, operand 2, single buffered']
    #allocation8 [shape = 'u8[8192]{0}', space=vmem, size = 0x2000, scoped, tag = 'input window, operand 3, single buffered']
    #allocation9 [shape = 's32[1]{0}', space=sflag, size = 0x4, scoped, tag = 'scoped memory for tpu_custom_call.1']
    #allocation10 [shape = 'u8[512]{0}', space=vmem, size = 0x400, scoped, tag = 'input window, operand 4, single buffered']
    #allocation11 [shape = 'u8[8192]{0}', space=vmem, size = 0x2000, scoped, tag = 'input window, operand 5, single buffered']
    #allocation12 [shape = 's32[1]{0}', space=sflag, size = 0x4, scoped, tag = 'scoped memory for tpu_custom_call.1']
    #allocation13 [shape = 'u8[512]{0}', space=vmem, size = 0x400, scoped, tag = 'input window, operand 6, single buffered']
    #allocation14 [shape = 'u8[8192]{0}', space=vmem, size = 0x2000, scoped, tag = 'input window, operand 7, single buffered']
    #allocation15 [shape = 's32[1]{0}', space=sflag, size = 0x4, scoped, tag = 'scoped memory for tpu_custom_call.1']
    #allocation16 [shape = 'u8[512]{0}', space=vmem, size = 0x400, scoped, tag = 'input window, operand 8, single buffered']
    #allocation17 [shape = 'u8[8192]{0}', space=vmem, size = 0x2000, scoped, tag = 'output window, operand 0, single buffered']
    %18 = vsyncpa [#allocation3], 0
    %19 = vsyncpa [#allocation6], 0
    %20 = vsyncpa [#allocation9], 0
    %21 = vsyncpa [#allocation12], 0
    %22 = vsyncpa [#allocation15], 0
    %23 = vsyncpa [#allocation4], 0
    // Predicated region
    $region2: #{tpu_custom_call.1} parent=1 // pred_check
      _
    $region3: #{tpu_custom_call.1} parent=1 // pred_check_branch
      %25 = sbr.rel (0) target = $region5
    $region4: #{tpu_custom_call.1} parent=1 // pred_region
      %s27 = ssub.s32 256, 256
      %28 = vsyncadd [#allocation3], %s27
      %s29 = sshll.u32 [#allocation2], 4
      %s30 = int_to_ptr.vmem [resolvable:$true] %s29
      %35 = dma.hbm_to_vmem [thread:$0]  %s0, 256, %s30, [#allocation3], 128, 128, 8
    $region5: #{tpu_custom_call.1} parent=1 // pred_fallthru
      _
    // Predicated region
    $region6: #{tpu_custom_call.1} parent=1 // pred_check
      _
    $region7: #{tpu_custom_call.1} parent=1 // pred_check_branch
      %37 = sbr.rel (0) target = $region9
    $region8: #{tpu_custom_call.1} parent=1 // pred_region
      %s39 = ssub.s32 256, 256
      %40 = vsyncadd [#allocation6], %s39
      %s41 = sshll.u32 [#allocation5], 4
      %s42 = int_to_ptr.vmem [resolvable:$true] %s41
      %47 = dma.hbm_to_vmem [thread:$0]  %s1, 256, %s42, [#allocation6], 128, 128, 8
    $region9: #{tpu_custom_call.1} parent=1 // pred_fallthru
      _
    // Predicated region
    $region10: #{tpu_custom_call.1} parent=1 // pred_check
      _
    $region11: #{tpu_custom_call.1} parent=1 // pred_check_branch
      %49 = sbr.rel (0) target = $region13
    $region12: #{tpu_custom_call.1} parent=1 // pred_region
      %s51 = ssub.s32 256, 256
      %52 = vsyncadd [#allocation6], %s51
      %s53 = sshll.u32 [#allocation7], 4
      %s54 = int_to_ptr.vmem [resolvable:$true] %s53
      %59 = dma.hbm_to_vmem [thread:$0]  %s2, 256, %s54, [#allocation6], 128, 128, 8
    $region13: #{tpu_custom_call.1} parent=1 // pred_fallthru
      _
    // Predicated region
    $region14: #{tpu_custom_call.1} parent=1 // pred_check
      _
    $region15: #{tpu_custom_call.1} parent=1 // pred_check_branch
      %61 = sbr.rel (0) target = $region17
    $region16: #{tpu_custom_call.1} parent=1 // pred_region
      %s63 = ssub.s32 256, 256
      %64 = vsyncadd [#allocation9], %s63
      %s65 = sshll.u32 [#allocation8], 4
      %s66 = int_to_ptr.vmem [resolvable:$true] %s65
      %71 = dma.hbm_to_vmem [thread:$0]  %s3, 256, %s66, [#allocation9], 64, 64, 4
    $region17: #{tpu_custom_call.1} parent=1 // pred_fallthru
      _
    // Predicated region
    $region18: #{tpu_custom_call.1} parent=1 // pred_check
      _
    $region19: #{tpu_custom_call.1} parent=1 // pred_check_branch
      %73 = sbr.rel (0) target = $region21
    $region20: #{tpu_custom_call.1} parent=1 // pred_region
      %s75 = ssub.s32 16, 16
      %76 = vsyncadd [#allocation9], %s75
      %s78 = sshll.u32 [#allocation10], 4
      %s79 = int_to_ptr.vmem [resolvable:$true] %s78
      %81 = dma.hbm_to_vmem [thread:$0]  %s4, 16, %s79, [#allocation9]
    $region21: #{tpu_custom_call.1} parent=1 // pred_fallthru
      _
    // Predicated region
    $region22: #{tpu_custom_call.1} parent=1 // pred_check
      _
    $region23: #{tpu_custom_call.1} parent=1 // pred_check_branch
      %83 = sbr.rel (0) target = $region25
    $region24: #{tpu_custom_call.1} parent=1 // pred_region
      %s85 = ssub.s32 256, 256
      %86 = vsyncadd [#allocation12], %s85
      %s87 = sshll.u32 [#allocation11], 4
      %s88 = int_to_ptr.vmem [resolvable:$true] %s87
      %93 = dma.hbm_to_vmem [thread:$0]  %s5, 256, %s88, [#allocation12], 64, 64, 4
    $region25: #{tpu_custom_call.1} parent=1 // pred_fallthru
      _
    // Predicated region
    $region26: #{tpu_custom_call.1} parent=1 // pred_check
      _
    $region27: #{tpu_custom_call.1} parent=1 // pred_check_branch
      %95 = sbr.rel (0) target = $region29
    $region28: #{tpu_custom_call.1} parent=1 // pred_region
      %s97 = ssub.s32 16, 16
      %98 = vsyncadd [#allocation12], %s97
      %s100 = sshll.u32 [#allocation13], 4
      %s101 = int_to_ptr.vmem [resolvable:$true] %s100
      %103 = dma.hbm_to_vmem [thread:$0]  %s6, 16, %s101, [#allocation12]
    $region29: #{tpu_custom_call.1} parent=1 // pred_fallthru
      _
    // Predicated region
    $region30: #{tpu_custom_call.1} parent=1 // pred_check
      _
    $region31: #{tpu_custom_call.1} parent=1 // pred_check_branch
      %105 = sbr.rel (0) target = $region33
    $region32: #{tpu_custom_call.1} parent=1 // pred_region
      %s107 = ssub.s32 256, 256
      %108 = vsyncadd [#allocation15], %s107
      %s109 = sshll.u32 [#allocation14], 4
      %s110 = int_to_ptr.vmem [resolvable:$true] %s109
      %115 = dma.hbm_to_vmem [thread:$0]  %s7, 256, %s110, [#allocation15], 64, 64, 4
    $region33: #{tpu_custom_call.1} parent=1 // pred_fallthru
      _
    // Predicated region
    $region34: #{tpu_custom_call.1} parent=1 // pred_check
      _
    $region35: #{tpu_custom_call.1} parent=1 // pred_check_branch
      %117 = sbr.rel (0) target = $region37
    $region36: #{tpu_custom_call.1} parent=1 // pred_region
      %s119 = ssub.s32 16, 16
      %120 = vsyncadd [#allocation15], %s119
      %s122 = sshll.u32 [#allocation16], 4
      %s123 = int_to_ptr.vmem [resolvable:$true] %s122
      %125 = dma.hbm_to_vmem [thread:$0]  %s8, 16, %s123, [#allocation15]
    $region37: #{tpu_custom_call.1} parent=1 // pred_fallthru
      _
    // Predicated region
    $region38: #{tpu_custom_call.1} parent=1 // pred_check
      _
    $region39: #{tpu_custom_call.1} parent=1 // pred_check_branch
      %127 = sbr.rel (0) target = $region41
    $region40: #{tpu_custom_call.1} parent=1 // pred_region
      _
    $region41: #{tpu_custom_call.1} parent=1 // pred_fallthru
      _
    // Predicated region
    $region42: #{tpu_custom_call.1} parent=1 // pred_check
      _
    $region43: #{tpu_custom_call.1} parent=1 // pred_check_branch
      %129 = sbr.rel (0) target = $region45
    $region44: #{tpu_custom_call.1} parent=1 // pred_region
      _
    $region45: #{tpu_custom_call.1} parent=1 // pred_fallthru
      _
    // Predicated region
    $region46: #{tpu_custom_call.1} parent=1 // pred_check
      _
    $region47: #{tpu_custom_call.1} parent=1 // pred_check_branch
      %131 = sbr.rel (0) target = $region49
    $region48: #{tpu_custom_call.1} parent=1 // pred_region
      _
    $region49: #{tpu_custom_call.1} parent=1 // pred_fallthru
      _
    // Predicated region
    $region50: #{tpu_custom_call.1} parent=1 // pred_check
      _
    $region51: #{tpu_custom_call.1} parent=1 // pred_check_branch
      %133 = sbr.rel (0) target = $region53
    $region52: #{tpu_custom_call.1} parent=1 // pred_region
      _
    $region53: #{tpu_custom_call.1} parent=1 // pred_fallthru
      _
    // Predicated region
    $region54: #{tpu_custom_call.1} parent=1 // pred_check
      _
    $region55: #{tpu_custom_call.1} parent=1 // pred_check_branch
      %135 = sbr.rel (0) target = $region57
    $region56: #{tpu_custom_call.1} parent=1 // pred_region
      %136 = dma.done [#allocation3], 256
    $region57: #{tpu_custom_call.1} parent=1 // pred_fallthru
      _
    // Predicated region
    $region58: #{tpu_custom_call.1} parent=1 // pred_check
      _
    $region59: #{tpu_custom_call.1} parent=1 // pred_check_branch
      %138 = sbr.rel (0) target = $region61
    $region60: #{tpu_custom_call.1} parent=1 // pred_region
      %139 = dma.done [#allocation6], 256
    $region61: #{tpu_custom_call.1} parent=1 // pred_fallthru
      _
    // Predicated region
    $region62: #{tpu_custom_call.1} parent=1 // pred_check
      _
    $region63: #{tpu_custom_call.1} parent=1 // pred_check_branch
      %141 = sbr.rel (0) target = $region65
    $region64: #{tpu_custom_call.1} parent=1 // pred_region
      %142 = dma.done [#allocation6], 256
    $region65: #{tpu_custom_call.1} parent=1 // pred_fallthru
      _
    // Predicated region
    $region66: #{tpu_custom_call.1} parent=1 // pred_check
      _
    $region67: #{tpu_custom_call.1} parent=1 // pred_check_branch
      %144 = sbr.rel (0) target = $region69
    $region68: #{tpu_custom_call.1} parent=1 // pred_region
      %145 = dma.done [#allocation9], 256
    $region69: #{tpu_custom_call.1} parent=1 // pred_fallthru
      _
    // Predicated region
    $region70: #{tpu_custom_call.1} parent=1 // pred_check
      _
    $region71: #{tpu_custom_call.1} parent=1 // pred_check_branch
      %147 = sbr.rel (0) target = $region73
    $region72: #{tpu_custom_call.1} parent=1 // pred_region
      %148 = dma.done [#allocation9], 16
    $region73: #{tpu_custom_call.1} parent=1 // pred_fallthru
      _
    // Predicated region
    $region74: #{tpu_custom_call.1} parent=1 // pred_check
      _
    $region75: #{tpu_custom_call.1} parent=1 // pred_check_branch
      %150 = sbr.rel (0) target = $region77
    $region76: #{tpu_custom_call.1} parent=1 // pred_region
      %151 = dma.done [#allocation12], 256
    $region77: #{tpu_custom_call.1} parent=1 // pred_fallthru
      _
    // Predicated region
    $region78: #{tpu_custom_call.1} parent=1 // pred_check
      _
    $region79: #{tpu_custom_call.1} parent=1 // pred_check_branch
      %153 = sbr.rel (0) target = $region81
    $region80: #{tpu_custom_call.1} parent=1 // pred_region
      %154 = dma.done [#allocation12], 16
    $region81: #{tpu_custom_call.1} parent=1 // pred_fallthru
      _
    // Predicated region
    $region82: #{tpu_custom_call.1} parent=1 // pred_check
      _
    $region83: #{tpu_custom_call.1} parent=1 // pred_check_branch
      %156 = sbr.rel (0) target = $region85
    $region84: #{tpu_custom_call.1} parent=1 // pred_region
      %157 = dma.done [#allocation15], 256
    $region85: #{tpu_custom_call.1} parent=1 // pred_fallthru
      _
    // Predicated region
    $region86: #{tpu_custom_call.1} parent=1 // pred_check
      _
    $region87: #{tpu_custom_call.1} parent=1 // pred_check_branch
      %159 = sbr.rel (0) target = $region89
    $region88: #{tpu_custom_call.1} parent=1 // pred_region
      %160 = dma.done [#allocation15], 16
    $region89: #{tpu_custom_call.1} parent=1 // pred_fallthru
      _
    %v162 = vld [vmem:[#allocation2] sm:$0xff]
    %v163 = vld [vmem:[#allocation2 + $0x8] sm:$0xff]
    %v164 = vpack.c.bf16 %v162, %v162
    %v165 = vpack.c.bf16 %v163, %v163
    %v166 = vld [vmem:[#allocation5] sm:$0xff]
    %v167 = vld [vmem:[#allocation5 + $0x8] sm:$0xff]
    %v168 = vpack.c.bf16 %v166, %v166
    %v169 = vpack.c.bf16 %v167, %v167
    %v170 = vld [vmem:[#allocation7] sm:$0xff]
    %v171 = vld [vmem:[#allocation7 + $0x8] sm:$0xff]
    %v172 = vpack.c.bf16 %v170, %v170
    %v173 = vpack.c.bf16 %v171, %v171
    %v174 = vld [vmem:[#allocation8] sm:$0xf]
    %v175 = vld [vmem:[#allocation8 + $0x4] sm:$0xf]
    %v176 = vld [vmem:[#allocation8 + $0x8] sm:$0xf]
    %v177 = vld [vmem:[#allocation8 + $0xc] sm:$0xf]
    %v178 = vld [vmem:[#allocation10] sm:$0x1]
    %v180 = vlaneseq
    %v181 = vshrl.u32 %v180, 7
    %v182 = vsub.s32 0, %v181
    %v183 = vrot.slane %v178, %v182
    %v187 = vunpack.c.l.b16 %v164
    %v188 = vunpack.c.l.b16 %v165
    %v189 = vpack.c.b16 %v188, %v187
    %v194 = vunpack.c.l.b16 %v174
    %v195 = vunpack.c.l.b16 %v175
    %v196 = vunpack.c.l.b16 %v176
    %v197 = vunpack.c.l.b16 %v177
    %v198 = vpack.c.b16 %v195, %v194
    %v199 = vpack.c.b16 %v197, %v196
    %vm202 = vcmask 261120
    %v204 = vsel %vm202, %v189, 0
    %206 = vmatprep.subr.bf16.mxu0 0
    %207 = vmatpush1.bf16.msra.mxu0 0
    %208 = vmatprep.subr.bf16.mxu0 0
    %209 = vmatpush1.bf16.msra.mxu0 0
    %210 = vmatprep.subr.bf16.mxu0 0
    %211 = vmatpush1.bf16.msra.mxu0 0
    %212 = vmatprep.subr.bf16.mxu0 0
    %213 = vmatpush1.bf16.msra.mxu0 0
    %214 = vmatprep.subr.bf16.mxu0 0
    %215 = vmatpush1.bf16.msra.mxu0 0
    %216 = vmatprep.subr.bf16.mxu0 0
    %217 = vmatpush1.bf16.msra.mxu0 0
    %218 = vmatprep.subr.bf16.mxu0 0
    %219 = vmatpush1.bf16.msra.mxu0 %v199
    %220 = vmatprep.subr.bf16.mxu0 0
    %221 = vmatpush1.bf16.msra.mxu0 %v198
    %222 = vmatprep.subr.bf16.mxu0 0
    %223 = vmatpush2.bf16.msra.mxu0 0
    %224 = vmatprep.subr.bf16.mxu0 0
    %225 = vmatpush2.bf16.msra.mxu0 0
    %226 = vmatprep.subr.bf16.mxu0 0
    %227 = vmatpush2.bf16.msra.mxu0 0
    %228 = vmatprep.subr.bf16.mxu0 0
    %229 = vmatpush2.bf16.msra.mxu0 0
    %230 = vmatprep.subr.bf16.mxu0 0
    %231 = vmatpush2.bf16.msra.mxu0 0
    %232 = vmatprep.subr.bf16.mxu0 0
    %233 = vmatpush2.bf16.msra.mxu0 0
    %234 = vmatprep.subr.bf16.mxu0 0
    %235 = vmatpush2.bf16.msra.mxu0 0
    %236 = vmatprep.subr.bf16.mxu0 0
    %237 = vmatpush2.bf16.msra.mxu0 0
    %238 = vmatprep.mubr.bf16.mxu0 0
    %239 = vmatmul.mubr.bf16.gmra.mxu0 %v204
    %v240 = vpop.f32.mrf.mxu0
    %v241 = vadd.f32 %v183, %v240
    %v242 = vpop.f32.mrf.mxu0
    %v243 = vpop.f32.mrf.mxu0
    %v244 = vadd.f32 %v183, %v243
    %v245 = vpop.f32.mrf.mxu0
    %246 = vdwg.mxu0
    %v247 = vld [vmem:[#allocation11] sm:$0xf]
    %v248 = vld [vmem:[#allocation11 + $0x4] sm:$0xf]
    %v249 = vld [vmem:[#allocation11 + $0x8] sm:$0xf]
    %v250 = vld [vmem:[#allocation11 + $0xc] sm:$0xf]
    %v251 = vld [vmem:[#allocation13] sm:$0x1]
    %v253 = vlaneseq
    %v254 = vshrl.u32 %v253, 7
    %v255 = vsub.s32 0, %v254
    %v256 = vrot.slane %v251, %v255
    %v260 = vunpack.c.l.b16 %v168
    %v261 = vunpack.c.l.b16 %v169
    %v262 = vpack.c.b16 %v261, %v260
    %v267 = vunpack.c.l.b16 %v247
    %v268 = vunpack.c.l.b16 %v248
    %v269 = vunpack.c.l.b16 %v249
    %v270 = vunpack.c.l.b16 %v250
    %v271 = vpack.c.b16 %v268, %v267
    %v272 = vpack.c.b16 %v270, %v269
    %v276 = vsel %vm202, %v262, 0
    %278 = vmatprep.subr.bf16.mxu0 0
    %279 = vmatpush1.bf16.msra.mxu0 0
    %280 = vmatprep.subr.bf16.mxu0 0
    %281 = vmatpush1.bf16.msra.mxu0 0
    %282 = vmatprep.subr.bf16.mxu0 0
    %283 = vmatpush1.bf16.msra.mxu0 0
    %284 = vmatprep.subr.bf16.mxu0 0
    %285 = vmatpush1.bf16.msra.mxu0 0
    %286 = vmatprep.subr.bf16.mxu0 0
    %287 = vmatpush1.bf16.msra.mxu0 0
    %288 = vmatprep.subr.bf16.mxu0 0
    %289 = vmatpush1.bf16.msra.mxu0 0
    %290 = vmatprep.subr.bf16.mxu0 0
    %291 = vmatpush1.bf16.msra.mxu0 %v272
    %292 = vmatprep.subr.bf16.mxu0 0
    %293 = vmatpush1.bf16.msra.mxu0 %v271
    %294 = vmatprep.subr.bf16.mxu0 0
    %295 = vmatpush2.bf16.msra.mxu0 0
    %296 = vmatprep.subr.bf16.mxu0 0
    %297 = vmatpush2.bf16.msra.mxu0 0
    %298 = vmatprep.subr.bf16.mxu0 0
    %299 = vmatpush2.bf16.msra.mxu0 0
    %300 = vmatprep.subr.bf16.mxu0 0
    %301 = vmatpush2.bf16.msra.mxu0 0
    %302 = vmatprep.subr.bf16.mxu0 0
    %303 = vmatpush2.bf16.msra.mxu0 0
    %304 = vmatprep.subr.bf16.mxu0 0
    %305 = vmatpush2.bf16.msra.mxu0 0
    %306 = vmatprep.subr.bf16.mxu0 0
    %307 = vmatpush2.bf16.msra.mxu0 0
    %308 = vmatprep.subr.bf16.mxu0 0
    %309 = vmatpush2.bf16.msra.mxu0 0
    %310 = vmatprep.mubr.bf16.mxu0 0
    %311 = vmatmul.mubr.bf16.gmra.mxu0 %v276
    %v312 = vpop.f32.mrf.mxu0
    %v313 = vadd.f32 %v256, %v312
    %v314 = vpop.f32.mrf.mxu0
    %v315 = vpop.f32.mrf.mxu0
    %v316 = vadd.f32 %v256, %v315
    %v317 = vpop.f32.mrf.mxu0
    %318 = vdwg.mxu0
    %v319 = vld [vmem:[#allocation14] sm:$0xf]
    %v320 = vld [vmem:[#allocation14 + $0x4] sm:$0xf]
    %v321 = vld [vmem:[#allocation14 + $0x8] sm:$0xf]
    %v322 = vld [vmem:[#allocation14 + $0xc] sm:$0xf]
    %v323 = vld [vmem:[#allocation16] sm:$0x1]
    %v325 = vlaneseq
    %v326 = vshrl.u32 %v325, 7
    %v327 = vsub.s32 0, %v326
    %v328 = vrot.slane %v323, %v327
    %v332 = vunpack.c.l.b16 %v172
    %v333 = vunpack.c.l.b16 %v173
    %v334 = vpack.c.b16 %v333, %v332
    %v339 = vunpack.c.l.b16 %v319
    %v340 = vunpack.c.l.b16 %v320
    %v341 = vunpack.c.l.b16 %v321
    %v342 = vunpack.c.l.b16 %v322
    %v343 = vpack.c.b16 %v340, %v339
    %v344 = vpack.c.b16 %v342, %v341
    %v348 = vsel %vm202, %v334, 0
    %350 = vmatprep.subr.bf16.mxu0 0
    %351 = vmatpush1.bf16.msra.mxu0 0
    %352 = vmatprep.subr.bf16.mxu0 0
    %353 = vmatpush1.bf16.msra.mxu0 0
    %354 = vmatprep.subr.bf16.mxu0 0
    %355 = vmatpush1.bf16.msra.mxu0 0
    %356 = vmatprep.subr.bf16.mxu0 0
    %357 = vmatpush1.bf16.msra.mxu0 0
    %358 = vmatprep.subr.bf16.mxu0 0
    %359 = vmatpush1.bf16.msra.mxu0 0
    %360 = vmatprep.subr.bf16.mxu0 0
    %361 = vmatpush1.bf16.msra.mxu0 0
    %362 = vmatprep.subr.bf16.mxu0 0
    %363 = vmatpush1.bf16.msra.mxu0 %v344
    %364 = vmatprep.subr.bf16.mxu0 0
    %365 = vmatpush1.bf16.msra.mxu0 %v343
    %366 = vmatprep.subr.bf16.mxu0 0
    %367 = vmatpush2.bf16.msra.mxu0 0
    %368 = vmatprep.subr.bf16.mxu0 0
    %369 = vmatpush2.bf16.msra.mxu0 0
    %370 = vmatprep.subr.bf16.mxu0 0
    %371 = vmatpush2.bf16.msra.mxu0 0
    %372 = vmatprep.subr.bf16.mxu0 0
    %373 = vmatpush2.bf16.msra.mxu0 0
    %374 = vmatprep.subr.bf16.mxu0 0
    %375 = vmatpush2.bf16.msra.mxu0 0
    %376 = vmatprep.subr.bf16.mxu0 0
    %377 = vmatpush2.bf16.msra.mxu0 0
    %378 = vmatprep.subr.bf16.mxu0 0
    %379 = vmatpush2.bf16.msra.mxu0 0
    %380 = vmatprep.subr.bf16.mxu0 0
    %381 = vmatpush2.bf16.msra.mxu0 0
    %382 = vmatprep.mubr.bf16.mxu0 0
    %383 = vmatmul.mubr.bf16.gmra.mxu0 %v348
    %v384 = vpop.f32.mrf.mxu0
    %v385 = vadd.f32 %v328, %v384
    %v386 = vpop.f32.mrf.mxu0
    %v387 = vpop.f32.mrf.mxu0
    %v388 = vadd.f32 %v328, %v387
    %v389 = vpop.f32.mrf.mxu0
    %390 = vdwg.mxu0
    %393 = vrot.lane.b32.xlu0 %v241, 120
    %v394 = vpop.permute.xlu0 %393
    %395 = vrot.lane.b32.xlu0 %v244, 120
    %v396 = vpop.permute.xlu0 %395
    %397 = vrot.lane.b32.xlu0 %v241, 112
    %v398 = vpop.permute.xlu0 %397
    %399 = vrot.lane.b32.xlu0 %v244, 112
    %v400 = vpop.permute.xlu0 %399
    %401 = vrot.lane.b32.xlu0 %v241, 104
    %v402 = vpop.permute.xlu0 %401
    %403 = vrot.lane.b32.xlu0 %v244, 104
    %v404 = vpop.permute.xlu0 %403
    %407 = vrot.lane.b32.xlu0 %v313, 120
    %v408 = vpop.permute.xlu0 %407
    %409 = vrot.lane.b32.xlu0 %v316, 120
    %v410 = vpop.permute.xlu0 %409
    %411 = vrot.lane.b32.xlu0 %v313, 112
    %v412 = vpop.permute.xlu0 %411
    %413 = vrot.lane.b32.xlu0 %v316, 112
    %v414 = vpop.permute.xlu0 %413
    %415 = vrot.lane.b32.xlu0 %v313, 104
    %v416 = vpop.permute.xlu0 %415
    %417 = vrot.lane.b32.xlu0 %v316, 104
    %v418 = vpop.permute.xlu0 %417
    %421 = vrot.lane.b32.xlu0 %v385, 120
    %v422 = vpop.permute.xlu0 %421
    %423 = vrot.lane.b32.xlu0 %v388, 120
    %v424 = vpop.permute.xlu0 %423
    %427 = vrot.lane.b32.xlu0 %v385, 112
    %v428 = vpop.permute.xlu0 %427
    %429 = vrot.lane.b32.xlu0 %v388, 112
    %v430 = vpop.permute.xlu0 %429
    %433 = vrot.lane.b32.xlu0 %v385, 104
    %v434 = vpop.permute.xlu0 %433
    %435 = vrot.lane.b32.xlu0 %v388, 104
    %v436 = vpop.permute.xlu0 %435
    %vm439 = vcmask 64512
    %v440 = vsel %vm439, %v241, 0
    %v442 = vsel %vm439, %v313, 0
    %444 = vmatprep.subr.mxu0 0.0
    %445 = vmatpush1.xpose.msra.mxu0 0.0
    %446 = vmatprep.subr.mxu0 0.0
    %447 = vmatpush1.xpose.msra.mxu0 0.0
    %448 = vmatprep.subr.mxu0 0.0
    %449 = vmatpush1.xpose.msra.mxu0 0.0
    %450 = vmatprep.subr.mxu0 0.0
    %451 = vmatpush1.xpose.msra.mxu0 0.0
    %452 = vmatprep.subr.mxu0 0.0
    %453 = vmatpush1.xpose.msra.mxu0 0.0
    %454 = vmatprep.subr.mxu0 0.0
    %455 = vmatpush1.xpose.msra.mxu0 0.0
    %456 = vmatprep.subr.mxu0 0.0
    %457 = vmatpush1.xpose.msra.mxu0 0.0
    %458 = vmatprep.subr.mxu0 0.0
    %459 = vmatpush1.xpose.msra.mxu0 0.0
    %460 = vmatprep.subr.mxu0 0.0
    %461 = vmatpush1.xpose.msra.mxu0 0.0
    %462 = vmatprep.subr.mxu0 0.0
    %463 = vmatpush1.xpose.msra.mxu0 0.0
    %464 = vmatprep.subr.mxu0 0.0
    %465 = vmatpush1.xpose.msra.mxu0 0.0
    %466 = vmatprep.subr.mxu0 0.0
    %467 = vmatpush1.xpose.msra.mxu0 0.0
    %468 = vmatprep.subr.mxu0 0.0
    %469 = vmatpush1.xpose.msra.mxu0 0.0
    %470 = vmatprep.subr.mxu0 0.0
    %471 = vmatpush1.xpose.msra.mxu0 0.0
    %472 = vmatprep.subr.mxu0 0.0
    %473 = vmatpush1.xpose.msra.mxu0 0.0
    %474 = vmatprep.subr.mxu0 0.0
    %475 = vmatpush1.xpose.msra.mxu0 %v442
    %476 = vmatprep.subr.mxu0 0.0
    %477 = vmatpush2.xpose.msra.mxu0 0.0
    %478 = vmatprep.subr.mxu0 0.0
    %479 = vmatpush2.xpose.msra.mxu0 0.0
    %480 = vmatprep.subr.mxu0 0.0
    %481 = vmatpush2.xpose.msra.mxu0 0.0
    %482 = vmatprep.subr.mxu0 0.0
    %483 = vmatpush2.xpose.msra.mxu0 0.0
    %484 = vmatprep.subr.mxu0 0.0
    %485 = vmatpush2.xpose.msra.mxu0 0.0
    %486 = vmatprep.subr.mxu0 0.0
    %487 = vmatpush2.xpose.msra.mxu0 0.0
    %488 = vmatprep.subr.mxu0 0.0
    %489 = vmatpush2.xpose.msra.mxu0 0.0
    %490 = vmatprep.subr.mxu0 0.0
    %491 = vmatpush2.xpose.msra.mxu0 0.0
    %492 = vmatprep.subr.mxu0 0.0
    %493 = vmatpush2.xpose.msra.mxu0 0.0
    %494 = vmatprep.subr.mxu0 0.0
    %495 = vmatpush2.xpose.msra.mxu0 0.0
    %496 = vmatprep.subr.mxu0 0.0
    %497 = vmatpush2.xpose.msra.mxu0 0.0
    %498 = vmatprep.subr.mxu0 0.0
    %499 = vmatpush2.xpose.msra.mxu0 0.0
    %500 = vmatprep.subr.mxu0 0.0
    %501 = vmatpush2.xpose.msra.mxu0 0.0
    %502 = vmatprep.subr.mxu0 0.0
    %503 = vmatpush2.xpose.msra.mxu0 0.0
    %504 = vmatprep.subr.mxu0 0.0
    %505 = vmatpush2.xpose.msra.mxu0 0.0
    %506 = vmatprep.subr.mxu0 0.0
    %507 = vmatpush2.xpose.msra.mxu0 0.0
    %508 = vmatprep.mubr.f32.mxu0 0.0
    %509 = vmatmul.mubr.f32.gmra.mxu0 %v440
    %v510 = vpop.f32.mrf.mxu0
    %v511 = vadd.f32 0.0, %v510
    %v512 = vpop.f32.mrf.mxu0
    %513 = vdwg.mxu0
    %v514 = vsel %vm439, %v244, 0
    %v516 = vsel %vm439, %v316, 0
    %518 = vmatprep.subr.mxu0 0.0
    %519 = vmatpush1.xpose.msra.mxu0 0.0
    %520 = vmatprep.subr.mxu0 0.0
    %521 = vmatpush1.xpose.msra.mxu0 0.0
    %522 = vmatprep.subr.mxu0 0.0
    %523 = vmatpush1.xpose.msra.mxu0 0.0
    %524 = vmatprep.subr.mxu0 0.0
    %525 = vmatpush1.xpose.msra.mxu0 0.0
    %526 = vmatprep.subr.mxu0 0.0
    %527 = vmatpush1.xpose.msra.mxu0 0.0
    %528 = vmatprep.subr.mxu0 0.0
    %529 = vmatpush1.xpose.msra.mxu0 0.0
    %530 = vmatprep.subr.mxu0 0.0
    %531 = vmatpush1.xpose.msra.mxu0 0.0
    %532 = vmatprep.subr.mxu0 0.0
    %533 = vmatpush1.xpose.msra.mxu0 0.0
    %534 = vmatprep.subr.mxu0 0.0
    %535 = vmatpush1.xpose.msra.mxu0 0.0
    %536 = vmatprep.subr.mxu0 0.0
    %537 = vmatpush1.xpose.msra.mxu0 0.0
    %538 = vmatprep.subr.mxu0 0.0
    %539 = vmatpush1.xpose.msra.mxu0 0.0
    %540 = vmatprep.subr.mxu0 0.0
    %541 = vmatpush1.xpose.msra.mxu0 0.0
    %542 = vmatprep.subr.mxu0 0.0
    %543 = vmatpush1.xpose.msra.mxu0 0.0
    %544 = vmatprep.subr.mxu0 0.0
    %545 = vmatpush1.xpose.msra.mxu0 0.0
    %546 = vmatprep.subr.mxu0 0.0
    %547 = vmatpush1.xpose.msra.mxu0 0.0
    %548 = vmatprep.subr.mxu0 0.0
    %549 = vmatpush1.xpose.msra.mxu0 %v516
    %550 = vmatprep.subr.mxu0 0.0
    %551 = vmatpush2.xpose.msra.mxu0 0.0
    %552 = vmatprep.subr.mxu0 0.0
    %553 = vmatpush2.xpose.msra.mxu0 0.0
    %554 = vmatprep.subr.mxu0 0.0
    %555 = vmatpush2.xpose.msra.mxu0 0.0
    %556 = vmatprep.subr.mxu0 0.0
    %557 = vmatpush2.xpose.msra.mxu0 0.0
    %558 = vmatprep.subr.mxu0 0.0
    %559 = vmatpush2.xpose.msra.mxu0 0.0
    %560 = vmatprep.subr.mxu0 0.0
    %561 = vmatpush2.xpose.msra.mxu0 0.0
    %562 = vmatprep.subr.mxu0 0.0
    %563 = vmatpush2.xpose.msra.mxu0 0.0
    %564 = vmatprep.subr.mxu0 0.0
    %565 = vmatpush2.xpose.msra.mxu0 0.0
    %566 = vmatprep.subr.mxu0 0.0
    %567 = vmatpush2.xpose.msra.mxu0 0.0
    %568 = vmatprep.subr.mxu0 0.0
    %569 = vmatpush2.xpose.msra.mxu0 0.0
    %570 = vmatprep.subr.mxu0 0.0
    %571 = vmatpush2.xpose.msra.mxu0 0.0
    %572 = vmatprep.subr.mxu0 0.0
    %573 = vmatpush2.xpose.msra.mxu0 0.0
    %574 = vmatprep.subr.mxu0 0.0
    %575 = vmatpush2.xpose.msra.mxu0 0.0
    %576 = vmatprep.subr.mxu0 0.0
    %577 = vmatpush2.xpose.msra.mxu0 0.0
    %578 = vmatprep.subr.mxu0 0.0
    %579 = vmatpush2.xpose.msra.mxu0 0.0
    %580 = vmatprep.subr.mxu0 0.0
    %581 = vmatpush2.xpose.msra.mxu0 0.0
    %582 = vmatprep.mubr.f32.mxu0 0.0
    %583 = vmatmul.mubr.f32.gmra.mxu0 %v514
    %v584 = vpop.f32.mrf.mxu0
    %v585 = vadd.f32 0.0, %v584
    %v586 = vpop.f32.mrf.mxu0
    %587 = vdwg.mxu0
    %v588 = vsel %vm439, %v394, 0
    %v590 = vsel %vm439, %v408, 0
    %592 = vmatprep.subr.mxu0 0.0
    %593 = vmatpush1.xpose.msra.mxu0 0.0
    %594 = vmatprep.subr.mxu0 0.0
    %595 = vmatpush1.xpose.msra.mxu0 0.0
    %596 = vmatprep.subr.mxu0 0.0
    %597 = vmatpush1.xpose.msra.mxu0 0.0
    %598 = vmatprep.subr.mxu0 0.0
    %599 = vmatpush1.xpose.msra.mxu0 0.0
    %600 = vmatprep.subr.mxu0 0.0
    %601 = vmatpush1.xpose.msra.mxu0 0.0
    %602 = vmatprep.subr.mxu0 0.0
    %603 = vmatpush1.xpose.msra.mxu0 0.0
    %604 = vmatprep.subr.mxu0 0.0
    %605 = vmatpush1.xpose.msra.mxu0 0.0
    %606 = vmatprep.subr.mxu0 0.0
    %607 = vmatpush1.xpose.msra.mxu0 0.0
    %608 = vmatprep.subr.mxu0 0.0
    %609 = vmatpush1.xpose.msra.mxu0 0.0
    %610 = vmatprep.subr.mxu0 0.0
    %611 = vmatpush1.xpose.msra.mxu0 0.0
    %612 = vmatprep.subr.mxu0 0.0
    %613 = vmatpush1.xpose.msra.mxu0 0.0
    %614 = vmatprep.subr.mxu0 0.0
    %615 = vmatpush1.xpose.msra.mxu0 0.0
    %616 = vmatprep.subr.mxu0 0.0
    %617 = vmatpush1.xpose.msra.mxu0 0.0
    %618 = vmatprep.subr.mxu0 0.0
    %619 = vmatpush1.xpose.msra.mxu0 0.0
    %620 = vmatprep.subr.mxu0 0.0
    %621 = vmatpush1.xpose.msra.mxu0 0.0
    %622 = vmatprep.subr.mxu0 0.0
    %623 = vmatpush1.xpose.msra.mxu0 %v590
    %624 = vmatprep.subr.mxu0 0.0
    %625 = vmatpush2.xpose.msra.mxu0 0.0
    %626 = vmatprep.subr.mxu0 0.0
    %627 = vmatpush2.xpose.msra.mxu0 0.0
    %628 = vmatprep.subr.mxu0 0.0
    %629 = vmatpush2.xpose.msra.mxu0 0.0
    %630 = vmatprep.subr.mxu0 0.0
    %631 = vmatpush2.xpose.msra.mxu0 0.0
    %632 = vmatprep.subr.mxu0 0.0
    %633 = vmatpush2.xpose.msra.mxu0 0.0
    %634 = vmatprep.subr.mxu0 0.0
    %635 = vmatpush2.xpose.msra.mxu0 0.0
    %636 = vmatprep.subr.mxu0 0.0
    %637 = vmatpush2.xpose.msra.mxu0 0.0
    %638 = vmatprep.subr.mxu0 0.0
    %639 = vmatpush2.xpose.msra.mxu0 0.0
    %640 = vmatprep.subr.mxu0 0.0
    %641 = vmatpush2.xpose.msra.mxu0 0.0
    %642 = vmatprep.subr.mxu0 0.0
    %643 = vmatpush2.xpose.msra.mxu0 0.0
    %644 = vmatprep.subr.mxu0 0.0
    %645 = vmatpush2.xpose.msra.mxu0 0.0
    %646 = vmatprep.subr.mxu0 0.0
    %647 = vmatpush2.xpose.msra.mxu0 0.0
    %648 = vmatprep.subr.mxu0 0.0
    %649 = vmatpush2.xpose.msra.mxu0 0.0
    %650 = vmatprep.subr.mxu0 0.0
    %651 = vmatpush2.xpose.msra.mxu0 0.0
    %652 = vmatprep.subr.mxu0 0.0
    %653 = vmatpush2.xpose.msra.mxu0 0.0
    %654 = vmatprep.subr.mxu0 0.0
    %655 = vmatpush2.xpose.msra.mxu0 0.0
    %656 = vmatprep.mubr.f32.mxu0 0.0
    %657 = vmatmul.mubr.f32.gmra.mxu0 %v588
    %v658 = vpop.f32.mrf.mxu0
    %v659 = vadd.f32 0.0, %v658
    %v660 = vpop.f32.mrf.mxu0
    %661 = vdwg.mxu0
    %v662 = vsel %vm439, %v396, 0
    %v664 = vsel %vm439, %v410, 0
    %666 = vmatprep.subr.mxu0 0.0
    %667 = vmatpush1.xpose.msra.mxu0 0.0
    %668 = vmatprep.subr.mxu0 0.0
    %669 = vmatpush1.xpose.msra.mxu0 0.0
    %670 = vmatprep.subr.mxu0 0.0
    %671 = vmatpush1.xpose.msra.mxu0 0.0
    %672 = vmatprep.subr.mxu0 0.0
    %673 = vmatpush1.xpose.msra.mxu0 0.0
    %674 = vmatprep.subr.mxu0 0.0
    %675 = vmatpush1.xpose.msra.mxu0 0.0
    %676 = vmatprep.subr.mxu0 0.0
    %677 = vmatpush1.xpose.msra.mxu0 0.0
    %678 = vmatprep.subr.mxu0 0.0
    %679 = vmatpush1.xpose.msra.mxu0 0.0
    %680 = vmatprep.subr.mxu0 0.0
    %681 = vmatpush1.xpose.msra.mxu0 0.0
    %682 = vmatprep.subr.mxu0 0.0
    %683 = vmatpush1.xpose.msra.mxu0 0.0
    %684 = vmatprep.subr.mxu0 0.0
    %685 = vmatpush1.xpose.msra.mxu0 0.0
    %686 = vmatprep.subr.mxu0 0.0
    %687 = vmatpush1.xpose.msra.mxu0 0.0
    %688 = vmatprep.subr.mxu0 0.0
    %689 = vmatpush1.xpose.msra.mxu0 0.0
    %690 = vmatprep.subr.mxu0 0.0
    %691 = vmatpush1.xpose.msra.mxu0 0.0
    %692 = vmatprep.subr.mxu0 0.0
    %693 = vmatpush1.xpose.msra.mxu0 0.0
    %694 = vmatprep.subr.mxu0 0.0
    %695 = vmatpush1.xpose.msra.mxu0 0.0
    %696 = vmatprep.subr.mxu0 0.0
    %697 = vmatpush1.xpose.msra.mxu0 %v664
    %698 = vmatprep.subr.mxu0 0.0
    %699 = vmatpush2.xpose.msra.mxu0 0.0
    %700 = vmatprep.subr.mxu0 0.0
    %701 = vmatpush2.xpose.msra.mxu0 0.0
    %702 = vmatprep.subr.mxu0 0.0
    %703 = vmatpush2.xpose.msra.mxu0 0.0
    %704 = vmatprep.subr.mxu0 0.0
    %705 = vmatpush2.xpose.msra.mxu0 0.0
    %706 = vmatprep.subr.mxu0 0.0
    %707 = vmatpush2.xpose.msra.mxu0 0.0
    %708 = vmatprep.subr.mxu0 0.0
    %709 = vmatpush2.xpose.msra.mxu0 0.0
    %710 = vmatprep.subr.mxu0 0.0
    %711 = vmatpush2.xpose.msra.mxu0 0.0
    %712 = vmatprep.subr.mxu0 0.0
    %713 = vmatpush2.xpose.msra.mxu0 0.0
    %714 = vmatprep.subr.mxu0 0.0
    %715 = vmatpush2.xpose.msra.mxu0 0.0
    %716 = vmatprep.subr.mxu0 0.0
    %717 = vmatpush2.xpose.msra.mxu0 0.0
    %718 = vmatprep.subr.mxu0 0.0
    %719 = vmatpush2.xpose.msra.mxu0 0.0
    %720 = vmatprep.subr.mxu0 0.0
    %721 = vmatpush2.xpose.msra.mxu0 0.0
    %722 = vmatprep.subr.mxu0 0.0
    %723 = vmatpush2.xpose.msra.mxu0 0.0
    %724 = vmatprep.subr.mxu0 0.0
    %725 = vmatpush2.xpose.msra.mxu0 0.0
    %726 = vmatprep.subr.mxu0 0.0
    %727 = vmatpush2.xpose.msra.mxu0 0.0
    %728 = vmatprep.subr.mxu0 0.0
    %729 = vmatpush2.xpose.msra.mxu0 0.0
    %730 = vmatprep.mubr.f32.mxu0 0.0
    %731 = vmatmul.mubr.f32.gmra.mxu0 %v662
    %v732 = vpop.f32.mrf.mxu0
    %v733 = vadd.f32 0.0, %v732
    %v734 = vpop.f32.mrf.mxu0
    %735 = vdwg.mxu0
    %v736 = vsel %vm439, %v398, 0
    %v738 = vsel %vm439, %v412, 0
    %740 = vmatprep.subr.mxu0 0.0
    %741 = vmatpush1.xpose.msra.mxu0 0.0
    %742 = vmatprep.subr.mxu0 0.0
    %743 = vmatpush1.xpose.msra.mxu0 0.0
    %744 = vmatprep.subr.mxu0 0.0
    %745 = vmatpush1.xpose.msra.mxu0 0.0
    %746 = vmatprep.subr.mxu0 0.0
    %747 = vmatpush1.xpose.msra.mxu0 0.0
    %748 = vmatprep.subr.mxu0 0.0
    %749 = vmatpush1.xpose.msra.mxu0 0.0
    %750 = vmatprep.subr.mxu0 0.0
    %751 = vmatpush1.xpose.msra.mxu0 0.0
    %752 = vmatprep.subr.mxu0 0.0
    %753 = vmatpush1.xpose.msra.mxu0 0.0
    %754 = vmatprep.subr.mxu0 0.0
    %755 = vmatpush1.xpose.msra.mxu0 0.0
    %756 = vmatprep.subr.mxu0 0.0
    %757 = vmatpush1.xpose.msra.mxu0 0.0
    %758 = vmatprep.subr.mxu0 0.0
    %759 = vmatpush1.xpose.msra.mxu0 0.0
    %760 = vmatprep.subr.mxu0 0.0
    %761 = vmatpush1.xpose.msra.mxu0 0.0
    %762 = vmatprep.subr.mxu0 0.0
    %763 = vmatpush1.xpose.msra.mxu0 0.0
    %764 = vmatprep.subr.mxu0 0.0
    %765 = vmatpush1.xpose.msra.mxu0 0.0
    %766 = vmatprep.subr.mxu0 0.0
    %767 = vmatpush1.xpose.msra.mxu0 0.0
    %768 = vmatprep.subr.mxu0 0.0
    %769 = vmatpush1.xpose.msra.mxu0 0.0
    %770 = vmatprep.subr.mxu0 0.0
    %771 = vmatpush1.xpose.msra.mxu0 %v738
    %772 = vmatprep.subr.mxu0 0.0
    %773 = vmatpush2.xpose.msra.mxu0 0.0
    %774 = vmatprep.subr.mxu0 0.0
    %775 = vmatpush2.xpose.msra.mxu0 0.0
    %776 = vmatprep.subr.mxu0 0.0
    %777 = vmatpush2.xpose.msra.mxu0 0.0
    %778 = vmatprep.subr.mxu0 0.0
    %779 = vmatpush2.xpose.msra.mxu0 0.0
    %780 = vmatprep.subr.mxu0 0.0
    %781 = vmatpush2.xpose.msra.mxu0 0.0
    %782 = vmatprep.subr.mxu0 0.0
    %783 = vmatpush2.xpose.msra.mxu0 0.0
    %784 = vmatprep.subr.mxu0 0.0
    %785 = vmatpush2.xpose.msra.mxu0 0.0
    %786 = vmatprep.subr.mxu0 0.0
    %787 = vmatpush2.xpose.msra.mxu0 0.0
    %788 = vmatprep.subr.mxu0 0.0
    %789 = vmatpush2.xpose.msra.mxu0 0.0
    %790 = vmatprep.subr.mxu0 0.0
    %791 = vmatpush2.xpose.msra.mxu0 0.0
    %792 = vmatprep.subr.mxu0 0.0
    %793 = vmatpush2.xpose.msra.mxu0 0.0
    %794 = vmatprep.subr.mxu0 0.0
    %795 = vmatpush2.xpose.msra.mxu0 0.0
    %796 = vmatprep.subr.mxu0 0.0
    %797 = vmatpush2.xpose.msra.mxu0 0.0
    %798 = vmatprep.subr.mxu0 0.0
    %799 = vmatpush2.xpose.msra.mxu0 0.0
    %800 = vmatprep.subr.mxu0 0.0
    %801 = vmatpush2.xpose.msra.mxu0 0.0
    %802 = vmatprep.subr.mxu0 0.0
    %803 = vmatpush2.xpose.msra.mxu0 0.0
    %804 = vmatprep.mubr.f32.mxu0 0.0
    %805 = vmatmul.mubr.f32.gmra.mxu0 %v736
    %v806 = vpop.f32.mrf.mxu0
    %v807 = vadd.f32 0.0, %v806
    %v808 = vpop.f32.mrf.mxu0
    %809 = vdwg.mxu0
    %v810 = vsel %vm439, %v400, 0
    %v812 = vsel %vm439, %v414, 0
    %814 = vmatprep.subr.mxu0 0.0
    %815 = vmatpush1.xpose.msra.mxu0 0.0
    %816 = vmatprep.subr.mxu0 0.0
    %817 = vmatpush1.xpose.msra.mxu0 0.0
    %818 = vmatprep.subr.mxu0 0.0
    %819 = vmatpush1.xpose.msra.mxu0 0.0
    %820 = vmatprep.subr.mxu0 0.0
    %821 = vmatpush1.xpose.msra.mxu0 0.0
    %822 = vmatprep.subr.mxu0 0.0
    %823 = vmatpush1.xpose.msra.mxu0 0.0
    %824 = vmatprep.subr.mxu0 0.0
    %825 = vmatpush1.xpose.msra.mxu0 0.0
    %826 = vmatprep.subr.mxu0 0.0
    %827 = vmatpush1.xpose.msra.mxu0 0.0
    %828 = vmatprep.subr.mxu0 0.0
    %829 = vmatpush1.xpose.msra.mxu0 0.0
    %830 = vmatprep.subr.mxu0 0.0
    %831 = vmatpush1.xpose.msra.mxu0 0.0
    %832 = vmatprep.subr.mxu0 0.0
    %833 = vmatpush1.xpose.msra.mxu0 0.0
    %834 = vmatprep.subr.mxu0 0.0
    %835 = vmatpush1.xpose.msra.mxu0 0.0
    %836 = vmatprep.subr.mxu0 0.0
    %837 = vmatpush1.xpose.msra.mxu0 0.0
    %838 = vmatprep.subr.mxu0 0.0
    %839 = vmatpush1.xpose.msra.mxu0 0.0
    %840 = vmatprep.subr.mxu0 0.0
    %841 = vmatpush1.xpose.msra.mxu0 0.0
    %842 = vmatprep.subr.mxu0 0.0
    %843 = vmatpush1.xpose.msra.mxu0 0.0
    %844 = vmatprep.subr.mxu0 0.0
    %845 = vmatpush1.xpose.msra.mxu0 %v812
    %846 = vmatprep.subr.mxu0 0.0
    %847 = vmatpush2.xpose.msra.mxu0 0.0
    %848 = vmatprep.subr.mxu0 0.0
    %849 = vmatpush2.xpose.msra.mxu0 0.0
    %850 = vmatprep.subr.mxu0 0.0
    %851 = vmatpush2.xpose.msra.mxu0 0.0
    %852 = vmatprep.subr.mxu0 0.0
    %853 = vmatpush2.xpose.msra.mxu0 0.0
    %854 = vmatprep.subr.mxu0 0.0
    %855 = vmatpush2.xpose.msra.mxu0 0.0
    %856 = vmatprep.subr.mxu0 0.0
    %857 = vmatpush2.xpose.msra.mxu0 0.0
    %858 = vmatprep.subr.mxu0 0.0
    %859 = vmatpush2.xpose.msra.mxu0 0.0
    %860 = vmatprep.subr.mxu0 0.0
    %861 = vmatpush2.xpose.msra.mxu0 0.0
    %862 = vmatprep.subr.mxu0 0.0
    %863 = vmatpush2.xpose.msra.mxu0 0.0
    %864 = vmatprep.subr.mxu0 0.0
    %865 = vmatpush2.xpose.msra.mxu0 0.0
    %866 = vmatprep.subr.mxu0 0.0
    %867 = vmatpush2.xpose.msra.mxu0 0.0
    %868 = vmatprep.subr.mxu0 0.0
    %869 = vmatpush2.xpose.msra.mxu0 0.0
    %870 = vmatprep.subr.mxu0 0.0
    %871 = vmatpush2.xpose.msra.mxu0 0.0
    %872 = vmatprep.subr.mxu0 0.0
    %873 = vmatpush2.xpose.msra.mxu0 0.0
    %874 = vmatprep.subr.mxu0 0.0
    %875 = vmatpush2.xpose.msra.mxu0 0.0
    %876 = vmatprep.subr.mxu0 0.0
    %877 = vmatpush2.xpose.msra.mxu0 0.0
    %878 = vmatprep.mubr.f32.mxu0 0.0
    %879 = vmatmul.mubr.f32.gmra.mxu0 %v810
    %v880 = vpop.f32.mrf.mxu0
    %v881 = vadd.f32 0.0, %v880
    %v882 = vpop.f32.mrf.mxu0
    %883 = vdwg.mxu0
    %v884 = vsel %vm439, %v402, 0
    %v886 = vsel %vm439, %v416, 0
    %888 = vmatprep.subr.mxu0 0.0
    %889 = vmatpush1.xpose.msra.mxu0 0.0
    %890 = vmatprep.subr.mxu0 0.0
    %891 = vmatpush1.xpose.msra.mxu0 0.0
    %892 = vmatprep.subr.mxu0 0.0
    %893 = vmatpush1.xpose.msra.mxu0 0.0
    %894 = vmatprep.subr.mxu0 0.0
    %895 = vmatpush1.xpose.msra.mxu0 0.0
    %896 = vmatprep.subr.mxu0 0.0
    %897 = vmatpush1.xpose.msra.mxu0 0.0
    %898 = vmatprep.subr.mxu0 0.0
    %899 = vmatpush1.xpose.msra.mxu0 0.0
    %900 = vmatprep.subr.mxu0 0.0
    %901 = vmatpush1.xpose.msra.mxu0 0.0
    %902 = vmatprep.subr.mxu0 0.0
    %903 = vmatpush1.xpose.msra.mxu0 0.0
    %904 = vmatprep.subr.mxu0 0.0
    %905 = vmatpush1.xpose.msra.mxu0 0.0
    %906 = vmatprep.subr.mxu0 0.0
    %907 = vmatpush1.xpose.msra.mxu0 0.0
    %908 = vmatprep.subr.mxu0 0.0
    %909 = vmatpush1.xpose.msra.mxu0 0.0
    %910 = vmatprep.subr.mxu0 0.0
    %911 = vmatpush1.xpose.msra.mxu0 0.0
    %912 = vmatprep.subr.mxu0 0.0
    %913 = vmatpush1.xpose.msra.mxu0 0.0
    %914 = vmatprep.subr.mxu0 0.0
    %915 = vmatpush1.xpose.msra.mxu0 0.0
    %916 = vmatprep.subr.mxu0 0.0
    %917 = vmatpush1.xpose.msra.mxu0 0.0
    %918 = vmatprep.subr.mxu0 0.0
    %919 = vmatpush1.xpose.msra.mxu0 %v886
    %920 = vmatprep.subr.mxu0 0.0
    %921 = vmatpush2.xpose.msra.mxu0 0.0
    %922 = vmatprep.subr.mxu0 0.0
    %923 = vmatpush2.xpose.msra.mxu0 0.0
    %924 = vmatprep.subr.mxu0 0.0
    %925 = vmatpush2.xpose.msra.mxu0 0.0
    %926 = vmatprep.subr.mxu0 0.0
    %927 = vmatpush2.xpose.msra.mxu0 0.0
    %928 = vmatprep.subr.mxu0 0.0
    %929 = vmatpush2.xpose.msra.mxu0 0.0
    %930 = vmatprep.subr.mxu0 0.0
    %931 = vmatpush2.xpose.msra.mxu0 0.0
    %932 = vmatprep.subr.mxu0 0.0
    %933 = vmatpush2.xpose.msra.mxu0 0.0
    %934 = vmatprep.subr.mxu0 0.0
    %935 = vmatpush2.xpose.msra.mxu0 0.0
    %936 = vmatprep.subr.mxu0 0.0
    %937 = vmatpush2.xpose.msra.mxu0 0.0
    %938 = vmatprep.subr.mxu0 0.0
    %939 = vmatpush2.xpose.msra.mxu0 0.0
    %940 = vmatprep.subr.mxu0 0.0
    %941 = vmatpush2.xpose.msra.mxu0 0.0
    %942 = vmatprep.subr.mxu0 0.0
    %943 = vmatpush2.xpose.msra.mxu0 0.0
    %944 = vmatprep.subr.mxu0 0.0
    %945 = vmatpush2.xpose.msra.mxu0 0.0
    %946 = vmatprep.subr.mxu0 0.0
    %947 = vmatpush2.xpose.msra.mxu0 0.0
    %948 = vmatprep.subr.mxu0 0.0
    %949 = vmatpush2.xpose.msra.mxu0 0.0
    %950 = vmatprep.subr.mxu0 0.0
    %951 = vmatpush2.xpose.msra.mxu0 0.0
    %952 = vmatprep.mubr.f32.mxu0 0.0
    %953 = vmatmul.mubr.f32.gmra.mxu0 %v884
    %v954 = vpop.f32.mrf.mxu0
    %v955 = vadd.f32 0.0, %v954
    %v956 = vpop.f32.mrf.mxu0
    %957 = vdwg.mxu0
    %v958 = vsel %vm439, %v404, 0
    %v960 = vsel %vm439, %v418, 0
    %962 = vmatprep.subr.mxu0 0.0
    %963 = vmatpush1.xpose.msra.mxu0 0.0
    %964 = vmatprep.subr.mxu0 0.0
    %965 = vmatpush1.xpose.msra.mxu0 0.0
    %966 = vmatprep.subr.mxu0 0.0
    %967 = vmatpush1.xpose.msra.mxu0 0.0
    %968 = vmatprep.subr.mxu0 0.0
    %969 = vmatpush1.xpose.msra.mxu0 0.0
    %970 = vmatprep.subr.mxu0 0.0
    %971 = vmatpush1.xpose.msra.mxu0 0.0
    %972 = vmatprep.subr.mxu0 0.0
    %973 = vmatpush1.xpose.msra.mxu0 0.0
    %974 = vmatprep.subr.mxu0 0.0
    %975 = vmatpush1.xpose.msra.mxu0 0.0
    %976 = vmatprep.subr.mxu0 0.0
    %977 = vmatpush1.xpose.msra.mxu0 0.0
    %978 = vmatprep.subr.mxu0 0.0
    %979 = vmatpush1.xpose.msra.mxu0 0.0
    %980 = vmatprep.subr.mxu0 0.0
    %981 = vmatpush1.xpose.msra.mxu0 0.0
    %982 = vmatprep.subr.mxu0 0.0
    %983 = vmatpush1.xpose.msra.mxu0 0.0
    %984 = vmatprep.subr.mxu0 0.0
    %985 = vmatpush1.xpose.msra.mxu0 0.0
    %986 = vmatprep.subr.mxu0 0.0
    %987 = vmatpush1.xpose.msra.mxu0 0.0
    %988 = vmatprep.subr.mxu0 0.0
    %989 = vmatpush1.xpose.msra.mxu0 0.0
    %990 = vmatprep.subr.mxu0 0.0
    %991 = vmatpush1.xpose.msra.mxu0 0.0
    %992 = vmatprep.subr.mxu0 0.0
    %993 = vmatpush1.xpose.msra.mxu0 %v960
    %994 = vmatprep.subr.mxu0 0.0
    %995 = vmatpush2.xpose.msra.mxu0 0.0
    %996 = vmatprep.subr.mxu0 0.0
    %997 = vmatpush2.xpose.msra.mxu0 0.0
    %998 = vmatprep.subr.mxu0 0.0
    %999 = vmatpush2.xpose.msra.mxu0 0.0
    %1000 = vmatprep.subr.mxu0 0.0
    %1001 = vmatpush2.xpose.msra.mxu0 0.0
    %1002 = vmatprep.subr.mxu0 0.0
    %1003 = vmatpush2.xpose.msra.mxu0 0.0
    %1004 = vmatprep.subr.mxu0 0.0
    %1005 = vmatpush2.xpose.msra.mxu0 0.0
    %1006 = vmatprep.subr.mxu0 0.0
    %1007 = vmatpush2.xpose.msra.mxu0 0.0
    %1008 = vmatprep.subr.mxu0 0.0
    %1009 = vmatpush2.xpose.msra.mxu0 0.0
    %1010 = vmatprep.subr.mxu0 0.0
    %1011 = vmatpush2.xpose.msra.mxu0 0.0
    %1012 = vmatprep.subr.mxu0 0.0
    %1013 = vmatpush2.xpose.msra.mxu0 0.0
    %1014 = vmatprep.subr.mxu0 0.0
    %1015 = vmatpush2.xpose.msra.mxu0 0.0
    %1016 = vmatprep.subr.mxu0 0.0
    %1017 = vmatpush2.xpose.msra.mxu0 0.0
    %1018 = vmatprep.subr.mxu0 0.0
    %1019 = vmatpush2.xpose.msra.mxu0 0.0
    %1020 = vmatprep.subr.mxu0 0.0
    %1021 = vmatpush2.xpose.msra.mxu0 0.0
    %1022 = vmatprep.subr.mxu0 0.0
    %1023 = vmatpush2.xpose.msra.mxu0 0.0
    %1024 = vmatprep.subr.mxu0 0.0
    %1025 = vmatpush2.xpose.msra.mxu0 0.0
    %1026 = vmatprep.mubr.f32.mxu0 0.0
    %1027 = vmatmul.mubr.f32.gmra.mxu0 %v958
    %v1028 = vpop.f32.mrf.mxu0
    %v1029 = vadd.f32 0.0, %v1028
    %v1030 = vpop.f32.mrf.mxu0
    %1031 = vdwg.mxu0
    %v1032 = vsel %vm439, %v511, -inf
    %1033 = vmax.xlane.f32.xlu0 %v1032
    %v1034 = vpop.xlane.xlu0 %1033
    %v1035 = vsel %vm439, %v585, -inf
    %1036 = vmax.xlane.f32.xlu0 %v1035
    %v1037 = vpop.xlane.xlu0 %1036
    %v1038 = vsel %vm439, %v659, -inf
    %1039 = vmax.xlane.f32.xlu0 %v1038
    %v1040 = vpop.xlane.xlu0 %1039
    %v1041 = vsel %vm439, %v733, -inf
    %1042 = vmax.xlane.f32.xlu0 %v1041
    %v1043 = vpop.xlane.xlu0 %1042
    %v1044 = vsel %vm439, %v807, -inf
    %1045 = vmax.xlane.f32.xlu0 %v1044
    %v1046 = vpop.xlane.xlu0 %1045
    %v1047 = vsel %vm439, %v881, -inf
    %1048 = vmax.xlane.f32.xlu0 %v1047
    %v1049 = vpop.xlane.xlu0 %1048
    %v1050 = vsel %vm439, %v955, -inf
    %1051 = vmax.xlane.f32.xlu0 %v1050
    %v1052 = vpop.xlane.xlu0 %1051
    %v1053 = vsel %vm439, %v1029, -inf
    %1054 = vmax.xlane.f32.xlu0 %v1053
    %v1055 = vpop.xlane.xlu0 %1054
    %v1056 = vsub.f32 %v511, %v1034
    %v1057 = vsub.f32 %v585, %v1037
    %v1058 = vsub.f32 %v659, %v1040
    %v1059 = vsub.f32 %v733, %v1043
    %v1060 = vsub.f32 %v807, %v1046
    %v1061 = vsub.f32 %v881, %v1049
    %v1062 = vsub.f32 %v955, %v1052
    %v1063 = vsub.f32 %v1029, %v1055
    %v1064 = vmul.f32 %v1056, 1.442695
    %v1065 = vpow.pop %v1064
    %v1066 = vmul.f32 %v1057, 1.442695
    %v1067 = vpow.pop %v1066
    %v1068 = vmul.f32 %v1058, 1.442695
    %v1069 = vpow.pop %v1068
    %v1070 = vmul.f32 %v1059, 1.442695
    %v1071 = vpow.pop %v1070
    %v1072 = vmul.f32 %v1060, 1.442695
    %v1073 = vpow.pop %v1072
    %v1074 = vmul.f32 %v1061, 1.442695
    %v1075 = vpow.pop %v1074
    %v1076 = vmul.f32 %v1062, 1.442695
    %v1077 = vpow.pop %v1076
    %v1078 = vmul.f32 %v1063, 1.442695
    %v1079 = vpow.pop %v1078
    %v1080 = vsel %vm439, %v1065, 0.0
    %1081 = vadd.xlane.f32.xlu0 %v1080
    %v1082 = vpop.xlane.xlu0 %1081
    %v1083 = vsel %vm439, %v1067, 0.0
    %1084 = vadd.xlane.f32.xlu0 %v1083
    %v1085 = vpop.xlane.xlu0 %1084
    %v1086 = vsel %vm439, %v1069, 0.0
    %1087 = vadd.xlane.f32.xlu0 %v1086
    %v1088 = vpop.xlane.xlu0 %1087
    %v1089 = vsel %vm439, %v1071, 0.0
    %1090 = vadd.xlane.f32.xlu0 %v1089
    %v1091 = vpop.xlane.xlu0 %1090
    %v1092 = vsel %vm439, %v1073, 0.0
    %1093 = vadd.xlane.f32.xlu0 %v1092
    %v1094 = vpop.xlane.xlu0 %1093
    %v1095 = vsel %vm439, %v1075, 0.0
    %1096 = vadd.xlane.f32.xlu0 %v1095
    %v1097 = vpop.xlane.xlu0 %1096
    %v1098 = vsel %vm439, %v1077, 0.0
    %1099 = vadd.xlane.f32.xlu0 %v1098
    %v1100 = vpop.xlane.xlu0 %1099
    %v1101 = vsel %vm439, %v1079, 0.0
    %1102 = vadd.xlane.f32.xlu0 %v1101
    %v1103 = vpop.xlane.xlu0 %1102
    %v1104 = vrcp.pop %v1082
    %v1105 = vrcp.pop %v1085
    %v1106 = vrcp.pop %v1088
    %v1107 = vrcp.pop %v1091
    %v1108 = vrcp.pop %v1094
    %v1109 = vrcp.pop %v1097
    %v1110 = vrcp.pop %v1100
    %v1111 = vrcp.pop %v1103
    %v1112 = vmul.f32 %v1065, %v1104
    %v1113 = vmul.f32 %v1067, %v1105
    %v1114 = vmul.f32 %v1069, %v1106
    %v1115 = vmul.f32 %v1071, %v1107
    %v1116 = vmul.f32 %v1073, %v1108
    %v1117 = vmul.f32 %v1075, %v1109
    %v1118 = vmul.f32 %v1077, %v1110
    %v1119 = vmul.f32 %v1079, %v1111
    %v1121 = vsel %vm439, %v1112, 0
    %1123 = vmatprep.subr.mxu0 0.0
    %1124 = vmatpush1.msra.mxu0 0.0
    %1125 = vmatprep.subr.mxu0 0.0
    %1126 = vmatpush1.msra.mxu0 0.0
    %1127 = vmatprep.subr.mxu0 0.0
    %1128 = vmatpush1.msra.mxu0 0.0
    %1129 = vmatprep.subr.mxu0 0.0
    %1130 = vmatpush1.msra.mxu0 0.0
    %1131 = vmatprep.subr.mxu0 0.0
    %1132 = vmatpush1.msra.mxu0 0.0
    %1133 = vmatprep.subr.mxu0 0.0
    %1134 = vmatpush1.msra.mxu0 0.0
    %1135 = vmatprep.subr.mxu0 0.0
    %1136 = vmatpush1.msra.mxu0 0.0
    %1137 = vmatprep.subr.mxu0 0.0
    %1138 = vmatpush1.msra.mxu0 0.0
    %1139 = vmatprep.subr.mxu0 0.0
    %1140 = vmatpush1.msra.mxu0 0.0
    %1141 = vmatprep.subr.mxu0 0.0
    %1142 = vmatpush1.msra.mxu0 0.0
    %1143 = vmatprep.subr.mxu0 0.0
    %1144 = vmatpush1.msra.mxu0 0.0
    %1145 = vmatprep.subr.mxu0 0.0
    %1146 = vmatpush1.msra.mxu0 0.0
    %1147 = vmatprep.subr.mxu0 0.0
    %1148 = vmatpush1.msra.mxu0 0.0
    %1149 = vmatprep.subr.mxu0 0.0
    %1150 = vmatpush1.msra.mxu0 0.0
    %1151 = vmatprep.subr.mxu0 0.0
    %1152 = vmatpush1.msra.mxu0 0.0
    %1153 = vmatprep.subr.mxu0 0.0
    %1154 = vmatpush1.msra.mxu0 %v385
    %1155 = vmatprep.subr.mxu0 0.0
    %1156 = vmatpush2.msra.mxu0 0.0
    %1157 = vmatprep.subr.mxu0 0.0
    %1158 = vmatpush2.msra.mxu0 0.0
    %1159 = vmatprep.subr.mxu0 0.0
    %1160 = vmatpush2.msra.mxu0 0.0
    %1161 = vmatprep.subr.mxu0 0.0
    %1162 = vmatpush2.msra.mxu0 0.0
    %1163 = vmatprep.subr.mxu0 0.0
    %1164 = vmatpush2.msra.mxu0 0.0
    %1165 = vmatprep.subr.mxu0 0.0
    %1166 = vmatpush2.msra.mxu0 0.0
    %1167 = vmatprep.subr.mxu0 0.0
    %1168 = vmatpush2.msra.mxu0 0.0
    %1169 = vmatprep.subr.mxu0 0.0
    %1170 = vmatpush2.msra.mxu0 0.0
    %1171 = vmatprep.subr.mxu0 0.0
    %1172 = vmatpush2.msra.mxu0 0.0
    %1173 = vmatprep.subr.mxu0 0.0
    %1174 = vmatpush2.msra.mxu0 0.0
    %1175 = vmatprep.subr.mxu0 0.0
    %1176 = vmatpush2.msra.mxu0 0.0
    %1177 = vmatprep.subr.mxu0 0.0
    %1178 = vmatpush2.msra.mxu0 0.0
    %1179 = vmatprep.subr.mxu0 0.0
    %1180 = vmatpush2.msra.mxu0 0.0
    %1181 = vmatprep.subr.mxu0 0.0
    %1182 = vmatpush2.msra.mxu0 0.0
    %1183 = vmatprep.subr.mxu0 0.0
    %1184 = vmatpush2.msra.mxu0 0.0
    %1185 = vmatprep.subr.mxu0 0.0
    %1186 = vmatpush2.msra.mxu0 0.0
    %1187 = vmatprep.mubr.f32.mxu0 0.0
    %1188 = vmatmul.mubr.f32.gmra.mxu0 %v1121
    %v1189 = vpop.f32.mrf.mxu0
    %v1190 = vadd.f32 0.0, %v1189
    %v1191 = vpop.f32.mrf.mxu0
    %1192 = vdwg.mxu0
    %v1194 = vsel %vm439, %v1113, 0
    %1196 = vmatprep.subr.mxu0 0.0
    %1197 = vmatpush1.msra.mxu0 0.0
    %1198 = vmatprep.subr.mxu0 0.0
    %1199 = vmatpush1.msra.mxu0 0.0
    %1200 = vmatprep.subr.mxu0 0.0
    %1201 = vmatpush1.msra.mxu0 0.0
    %1202 = vmatprep.subr.mxu0 0.0
    %1203 = vmatpush1.msra.mxu0 0.0
    %1204 = vmatprep.subr.mxu0 0.0
    %1205 = vmatpush1.msra.mxu0 0.0
    %1206 = vmatprep.subr.mxu0 0.0
    %1207 = vmatpush1.msra.mxu0 0.0
    %1208 = vmatprep.subr.mxu0 0.0
    %1209 = vmatpush1.msra.mxu0 0.0
    %1210 = vmatprep.subr.mxu0 0.0
    %1211 = vmatpush1.msra.mxu0 0.0
    %1212 = vmatprep.subr.mxu0 0.0
    %1213 = vmatpush1.msra.mxu0 0.0
    %1214 = vmatprep.subr.mxu0 0.0
    %1215 = vmatpush1.msra.mxu0 0.0
    %1216 = vmatprep.subr.mxu0 0.0
    %1217 = vmatpush1.msra.mxu0 0.0
    %1218 = vmatprep.subr.mxu0 0.0
    %1219 = vmatpush1.msra.mxu0 0.0
    %1220 = vmatprep.subr.mxu0 0.0
    %1221 = vmatpush1.msra.mxu0 0.0
    %1222 = vmatprep.subr.mxu0 0.0
    %1223 = vmatpush1.msra.mxu0 0.0
    %1224 = vmatprep.subr.mxu0 0.0
    %1225 = vmatpush1.msra.mxu0 0.0
    %1226 = vmatprep.subr.mxu0 0.0
    %1227 = vmatpush1.msra.mxu0 %v388
    %1228 = vmatprep.subr.mxu0 0.0
    %1229 = vmatpush2.msra.mxu0 0.0
    %1230 = vmatprep.subr.mxu0 0.0
    %1231 = vmatpush2.msra.mxu0 0.0
    %1232 = vmatprep.subr.mxu0 0.0
    %1233 = vmatpush2.msra.mxu0 0.0
    %1234 = vmatprep.subr.mxu0 0.0
    %1235 = vmatpush2.msra.mxu0 0.0
    %1236 = vmatprep.subr.mxu0 0.0
    %1237 = vmatpush2.msra.mxu0 0.0
    %1238 = vmatprep.subr.mxu0 0.0
    %1239 = vmatpush2.msra.mxu0 0.0
    %1240 = vmatprep.subr.mxu0 0.0
    %1241 = vmatpush2.msra.mxu0 0.0
    %1242 = vmatprep.subr.mxu0 0.0
    %1243 = vmatpush2.msra.mxu0 0.0
    %1244 = vmatprep.subr.mxu0 0.0
    %1245 = vmatpush2.msra.mxu0 0.0
    %1246 = vmatprep.subr.mxu0 0.0
    %1247 = vmatpush2.msra.mxu0 0.0
    %1248 = vmatprep.subr.mxu0 0.0
    %1249 = vmatpush2.msra.mxu0 0.0
    %1250 = vmatprep.subr.mxu0 0.0
    %1251 = vmatpush2.msra.mxu0 0.0
    %1252 = vmatprep.subr.mxu0 0.0
    %1253 = vmatpush2.msra.mxu0 0.0
    %1254 = vmatprep.subr.mxu0 0.0
    %1255 = vmatpush2.msra.mxu0 0.0
    %1256 = vmatprep.subr.mxu0 0.0
    %1257 = vmatpush2.msra.mxu0 0.0
    %1258 = vmatprep.subr.mxu0 0.0
    %1259 = vmatpush2.msra.mxu0 0.0
    %1260 = vmatprep.mubr.f32.mxu0 0.0
    %1261 = vmatmul.mubr.f32.gmra.mxu0 %v1194
    %v1262 = vpop.f32.mrf.mxu0
    %v1263 = vadd.f32 0.0, %v1262
    %v1264 = vpop.f32.mrf.mxu0
    %1265 = vdwg.mxu0
    %v1267 = vsel %vm439, %v1114, 0
    %1269 = vmatprep.subr.mxu0 0.0
    %1270 = vmatpush1.msra.mxu0 0.0
    %1271 = vmatprep.subr.mxu0 0.0
    %1272 = vmatpush1.msra.mxu0 0.0
    %1273 = vmatprep.subr.mxu0 0.0
    %1274 = vmatpush1.msra.mxu0 0.0
    %1275 = vmatprep.subr.mxu0 0.0
    %1276 = vmatpush1.msra.mxu0 0.0
    %1277 = vmatprep.subr.mxu0 0.0
    %1278 = vmatpush1.msra.mxu0 0.0
    %1279 = vmatprep.subr.mxu0 0.0
    %1280 = vmatpush1.msra.mxu0 0.0
    %1281 = vmatprep.subr.mxu0 0.0
    %1282 = vmatpush1.msra.mxu0 0.0
    %1283 = vmatprep.subr.mxu0 0.0
    %1284 = vmatpush1.msra.mxu0 0.0
    %1285 = vmatprep.subr.mxu0 0.0
    %1286 = vmatpush1.msra.mxu0 0.0
    %1287 = vmatprep.subr.mxu0 0.0
    %1288 = vmatpush1.msra.mxu0 0.0
    %1289 = vmatprep.subr.mxu0 0.0
    %1290 = vmatpush1.msra.mxu0 0.0
    %1291 = vmatprep.subr.mxu0 0.0
    %1292 = vmatpush1.msra.mxu0 0.0
    %1293 = vmatprep.subr.mxu0 0.0
    %1294 = vmatpush1.msra.mxu0 0.0
    %1295 = vmatprep.subr.mxu0 0.0
    %1296 = vmatpush1.msra.mxu0 0.0
    %1297 = vmatprep.subr.mxu0 0.0
    %1298 = vmatpush1.msra.mxu0 0.0
    %1299 = vmatprep.subr.mxu0 0.0
    %1300 = vmatpush1.msra.mxu0 %v422
    %1301 = vmatprep.subr.mxu0 0.0
    %1302 = vmatpush2.msra.mxu0 0.0
    %1303 = vmatprep.subr.mxu0 0.0
    %1304 = vmatpush2.msra.mxu0 0.0
    %1305 = vmatprep.subr.mxu0 0.0
    %1306 = vmatpush2.msra.mxu0 0.0
    %1307 = vmatprep.subr.mxu0 0.0
    %1308 = vmatpush2.msra.mxu0 0.0
    %1309 = vmatprep.subr.mxu0 0.0
    %1310 = vmatpush2.msra.mxu0 0.0
    %1311 = vmatprep.subr.mxu0 0.0
    %1312 = vmatpush2.msra.mxu0 0.0
    %1313 = vmatprep.subr.mxu0 0.0
    %1314 = vmatpush2.msra.mxu0 0.0
    %1315 = vmatprep.subr.mxu0 0.0
    %1316 = vmatpush2.msra.mxu0 0.0
    %1317 = vmatprep.subr.mxu0 0.0
    %1318 = vmatpush2.msra.mxu0 0.0
    %1319 = vmatprep.subr.mxu0 0.0
    %1320 = vmatpush2.msra.mxu0 0.0
    %1321 = vmatprep.subr.mxu0 0.0
    %1322 = vmatpush2.msra.mxu0 0.0
    %1323 = vmatprep.subr.mxu0 0.0
    %1324 = vmatpush2.msra.mxu0 0.0
    %1325 = vmatprep.subr.mxu0 0.0
    %1326 = vmatpush2.msra.mxu0 0.0
    %1327 = vmatprep.subr.mxu0 0.0
    %1328 = vmatpush2.msra.mxu0 0.0
    %1329 = vmatprep.subr.mxu0 0.0
    %1330 = vmatpush2.msra.mxu0 0.0
    %1331 = vmatprep.subr.mxu0 0.0
    %1332 = vmatpush2.msra.mxu0 0.0
    %1333 = vmatprep.mubr.f32.mxu0 0.0
    %1334 = vmatmul.mubr.f32.gmra.mxu0 %v1267
    %v1335 = vpop.f32.mrf.mxu0
    %v1336 = vadd.f32 0.0, %v1335
    %v1337 = vpop.f32.mrf.mxu0
    %1338 = vdwg.mxu0
    %v1340 = vsel %vm439, %v1115, 0
    %1342 = vmatprep.subr.mxu0 0.0
    %1343 = vmatpush1.msra.mxu0 0.0
    %1344 = vmatprep.subr.mxu0 0.0
    %1345 = vmatpush1.msra.mxu0 0.0
    %1346 = vmatprep.subr.mxu0 0.0
    %1347 = vmatpush1.msra.mxu0 0.0
    %1348 = vmatprep.subr.mxu0 0.0
    %1349 = vmatpush1.msra.mxu0 0.0
    %1350 = vmatprep.subr.mxu0 0.0
    %1351 = vmatpush1.msra.mxu0 0.0
    %1352 = vmatprep.subr.mxu0 0.0
    %1353 = vmatpush1.msra.mxu0 0.0
    %1354 = vmatprep.subr.mxu0 0.0
    %1355 = vmatpush1.msra.mxu0 0.0
    %1356 = vmatprep.subr.mxu0 0.0
    %1357 = vmatpush1.msra.mxu0 0.0
    %1358 = vmatprep.subr.mxu0 0.0
    %1359 = vmatpush1.msra.mxu0 0.0
    %1360 = vmatprep.subr.mxu0 0.0
    %1361 = vmatpush1.msra.mxu0 0.0
    %1362 = vmatprep.subr.mxu0 0.0
    %1363 = vmatpush1.msra.mxu0 0.0
    %1364 = vmatprep.subr.mxu0 0.0
    %1365 = vmatpush1.msra.mxu0 0.0
    %1366 = vmatprep.subr.mxu0 0.0
    %1367 = vmatpush1.msra.mxu0 0.0
    %1368 = vmatprep.subr.mxu0 0.0
    %1369 = vmatpush1.msra.mxu0 0.0
    %1370 = vmatprep.subr.mxu0 0.0
    %1371 = vmatpush1.msra.mxu0 0.0
    %1372 = vmatprep.subr.mxu0 0.0
    %1373 = vmatpush1.msra.mxu0 %v424
    %1374 = vmatprep.subr.mxu0 0.0
    %1375 = vmatpush2.msra.mxu0 0.0
    %1376 = vmatprep.subr.mxu0 0.0
    %1377 = vmatpush2.msra.mxu0 0.0
    %1378 = vmatprep.subr.mxu0 0.0
    %1379 = vmatpush2.msra.mxu0 0.0
    %1380 = vmatprep.subr.mxu0 0.0
    %1381 = vmatpush2.msra.mxu0 0.0
    %1382 = vmatprep.subr.mxu0 0.0
    %1383 = vmatpush2.msra.mxu0 0.0
    %1384 = vmatprep.subr.mxu0 0.0
    %1385 = vmatpush2.msra.mxu0 0.0
    %1386 = vmatprep.subr.mxu0 0.0
    %1387 = vmatpush2.msra.mxu0 0.0
    %1388 = vmatprep.subr.mxu0 0.0
    %1389 = vmatpush2.msra.mxu0 0.0
    %1390 = vmatprep.subr.mxu0 0.0
    %1391 = vmatpush2.msra.mxu0 0.0
    %1392 = vmatprep.subr.mxu0 0.0
    %1393 = vmatpush2.msra.mxu0 0.0
    %1394 = vmatprep.subr.mxu0 0.0
    %1395 = vmatpush2.msra.mxu0 0.0
    %1396 = vmatprep.subr.mxu0 0.0
    %1397 = vmatpush2.msra.mxu0 0.0
    %1398 = vmatprep.subr.mxu0 0.0
    %1399 = vmatpush2.msra.mxu0 0.0
    %1400 = vmatprep.subr.mxu0 0.0
    %1401 = vmatpush2.msra.mxu0 0.0
    %1402 = vmatprep.subr.mxu0 0.0
    %1403 = vmatpush2.msra.mxu0 0.0
    %1404 = vmatprep.subr.mxu0 0.0
    %1405 = vmatpush2.msra.mxu0 0.0
    %1406 = vmatprep.mubr.f32.mxu0 0.0
    %1407 = vmatmul.mubr.f32.gmra.mxu0 %v1340
    %v1408 = vpop.f32.mrf.mxu0
    %v1409 = vadd.f32 0.0, %v1408
    %v1410 = vpop.f32.mrf.mxu0
    %1411 = vdwg.mxu0
    %v1413 = vsel %vm439, %v1116, 0
    %1415 = vmatprep.subr.mxu0 0.0
    %1416 = vmatpush1.msra.mxu0 0.0
    %1417 = vmatprep.subr.mxu0 0.0
    %1418 = vmatpush1.msra.mxu0 0.0
    %1419 = vmatprep.subr.mxu0 0.0
    %1420 = vmatpush1.msra.mxu0 0.0
    %1421 = vmatprep.subr.mxu0 0.0
    %1422 = vmatpush1.msra.mxu0 0.0
    %1423 = vmatprep.subr.mxu0 0.0
    %1424 = vmatpush1.msra.mxu0 0.0
    %1425 = vmatprep.subr.mxu0 0.0
    %1426 = vmatpush1.msra.mxu0 0.0
    %1427 = vmatprep.subr.mxu0 0.0
    %1428 = vmatpush1.msra.mxu0 0.0
    %1429 = vmatprep.subr.mxu0 0.0
    %1430 = vmatpush1.msra.mxu0 0.0
    %1431 = vmatprep.subr.mxu0 0.0
    %1432 = vmatpush1.msra.mxu0 0.0
    %1433 = vmatprep.subr.mxu0 0.0
    %1434 = vmatpush1.msra.mxu0 0.0
    %1435 = vmatprep.subr.mxu0 0.0
    %1436 = vmatpush1.msra.mxu0 0.0
    %1437 = vmatprep.subr.mxu0 0.0
    %1438 = vmatpush1.msra.mxu0 0.0
    %1439 = vmatprep.subr.mxu0 0.0
    %1440 = vmatpush1.msra.mxu0 0.0
    %1441 = vmatprep.subr.mxu0 0.0
    %1442 = vmatpush1.msra.mxu0 0.0
    %1443 = vmatprep.subr.mxu0 0.0
    %1444 = vmatpush1.msra.mxu0 0.0
    %1445 = vmatprep.subr.mxu0 0.0
    %1446 = vmatpush1.msra.mxu0 %v428
    %1447 = vmatprep.subr.mxu0 0.0
    %1448 = vmatpush2.msra.mxu0 0.0
    %1449 = vmatprep.subr.mxu0 0.0
    %1450 = vmatpush2.msra.mxu0 0.0
    %1451 = vmatprep.subr.mxu0 0.0
    %1452 = vmatpush2.msra.mxu0 0.0
    %1453 = vmatprep.subr.mxu0 0.0
    %1454 = vmatpush2.msra.mxu0 0.0
    %1455 = vmatprep.subr.mxu0 0.0
    %1456 = vmatpush2.msra.mxu0 0.0
    %1457 = vmatprep.subr.mxu0 0.0
    %1458 = vmatpush2.msra.mxu0 0.0
    %1459 = vmatprep.subr.mxu0 0.0
    %1460 = vmatpush2.msra.mxu0 0.0
    %1461 = vmatprep.subr.mxu0 0.0
    %1462 = vmatpush2.msra.mxu0 0.0
    %1463 = vmatprep.subr.mxu0 0.0
    %1464 = vmatpush2.msra.mxu0 0.0
    %1465 = vmatprep.subr.mxu0 0.0
    %1466 = vmatpush2.msra.mxu0 0.0
    %1467 = vmatprep.subr.mxu0 0.0
    %1468 = vmatpush2.msra.mxu0 0.0
    %1469 = vmatprep.subr.mxu0 0.0
    %1470 = vmatpush2.msra.mxu0 0.0
    %1471 = vmatprep.subr.mxu0 0.0
    %1472 = vmatpush2.msra.mxu0 0.0
    %1473 = vmatprep.subr.mxu0 0.0
    %1474 = vmatpush2.msra.mxu0 0.0
    %1475 = vmatprep.subr.mxu0 0.0
    %1476 = vmatpush2.msra.mxu0 0.0
    %1477 = vmatprep.subr.mxu0 0.0
    %1478 = vmatpush2.msra.mxu0 0.0
    %1479 = vmatprep.mubr.f32.mxu0 0.0
    %1480 = vmatmul.mubr.f32.gmra.mxu0 %v1413
    %v1481 = vpop.f32.mrf.mxu0
    %v1482 = vadd.f32 0.0, %v1481
    %v1483 = vpop.f32.mrf.mxu0
    %1484 = vdwg.mxu0
    %v1486 = vsel %vm439, %v1117, 0
    %1488 = vmatprep.subr.mxu0 0.0
    %1489 = vmatpush1.msra.mxu0 0.0
    %1490 = vmatprep.subr.mxu0 0.0
    %1491 = vmatpush1.msra.mxu0 0.0
    %1492 = vmatprep.subr.mxu0 0.0
    %1493 = vmatpush1.msra.mxu0 0.0
    %1494 = vmatprep.subr.mxu0 0.0
    %1495 = vmatpush1.msra.mxu0 0.0
    %1496 = vmatprep.subr.mxu0 0.0
    %1497 = vmatpush1.msra.mxu0 0.0
    %1498 = vmatprep.subr.mxu0 0.0
    %1499 = vmatpush1.msra.mxu0 0.0
    %1500 = vmatprep.subr.mxu0 0.0
    %1501 = vmatpush1.msra.mxu0 0.0
    %1502 = vmatprep.subr.mxu0 0.0
    %1503 = vmatpush1.msra.mxu0 0.0
    %1504 = vmatprep.subr.mxu0 0.0
    %1505 = vmatpush1.msra.mxu0 0.0
    %1506 = vmatprep.subr.mxu0 0.0
    %1507 = vmatpush1.msra.mxu0 0.0
    %1508 = vmatprep.subr.mxu0 0.0
    %1509 = vmatpush1.msra.mxu0 0.0
    %1510 = vmatprep.subr.mxu0 0.0
    %1511 = vmatpush1.msra.mxu0 0.0
    %1512 = vmatprep.subr.mxu0 0.0
    %1513 = vmatpush1.msra.mxu0 0.0
    %1514 = vmatprep.subr.mxu0 0.0
    %1515 = vmatpush1.msra.mxu0 0.0
    %1516 = vmatprep.subr.mxu0 0.0
    %1517 = vmatpush1.msra.mxu0 0.0
    %1518 = vmatprep.subr.mxu0 0.0
    %1519 = vmatpush1.msra.mxu0 %v430
    %1520 = vmatprep.subr.mxu0 0.0
    %1521 = vmatpush2.msra.mxu0 0.0
    %1522 = vmatprep.subr.mxu0 0.0
    %1523 = vmatpush2.msra.mxu0 0.0
    %1524 = vmatprep.subr.mxu0 0.0
    %1525 = vmatpush2.msra.mxu0 0.0
    %1526 = vmatprep.subr.mxu0 0.0
    %1527 = vmatpush2.msra.mxu0 0.0
    %1528 = vmatprep.subr.mxu0 0.0
    %1529 = vmatpush2.msra.mxu0 0.0
    %1530 = vmatprep.subr.mxu0 0.0
    %1531 = vmatpush2.msra.mxu0 0.0
    %1532 = vmatprep.subr.mxu0 0.0
    %1533 = vmatpush2.msra.mxu0 0.0
    %1534 = vmatprep.subr.mxu0 0.0
    %1535 = vmatpush2.msra.mxu0 0.0
    %1536 = vmatprep.subr.mxu0 0.0
    %1537 = vmatpush2.msra.mxu0 0.0
    %1538 = vmatprep.subr.mxu0 0.0
    %1539 = vmatpush2.msra.mxu0 0.0
    %1540 = vmatprep.subr.mxu0 0.0
    %1541 = vmatpush2.msra.mxu0 0.0
    %1542 = vmatprep.subr.mxu0 0.0
    %1543 = vmatpush2.msra.mxu0 0.0
    %1544 = vmatprep.subr.mxu0 0.0
    %1545 = vmatpush2.msra.mxu0 0.0
    %1546 = vmatprep.subr.mxu0 0.0
    %1547 = vmatpush2.msra.mxu0 0.0
    %1548 = vmatprep.subr.mxu0 0.0
    %1549 = vmatpush2.msra.mxu0 0.0
    %1550 = vmatprep.subr.mxu0 0.0
    %1551 = vmatpush2.msra.mxu0 0.0
    %1552 = vmatprep.mubr.f32.mxu0 0.0
    %1553 = vmatmul.mubr.f32.gmra.mxu0 %v1486
    %v1554 = vpop.f32.mrf.mxu0
    %v1555 = vadd.f32 0.0, %v1554
    %v1556 = vpop.f32.mrf.mxu0
    %1557 = vdwg.mxu0
    %v1559 = vsel %vm439, %v1118, 0
    %1561 = vmatprep.subr.mxu0 0.0
    %1562 = vmatpush1.msra.mxu0 0.0
    %1563 = vmatprep.subr.mxu0 0.0
    %1564 = vmatpush1.msra.mxu0 0.0
    %1565 = vmatprep.subr.mxu0 0.0
    %1566 = vmatpush1.msra.mxu0 0.0
    %1567 = vmatprep.subr.mxu0 0.0
    %1568 = vmatpush1.msra.mxu0 0.0
    %1569 = vmatprep.subr.mxu0 0.0
    %1570 = vmatpush1.msra.mxu0 0.0
    %1571 = vmatprep.subr.mxu0 0.0
    %1572 = vmatpush1.msra.mxu0 0.0
    %1573 = vmatprep.subr.mxu0 0.0
    %1574 = vmatpush1.msra.mxu0 0.0
    %1575 = vmatprep.subr.mxu0 0.0
    %1576 = vmatpush1.msra.mxu0 0.0
    %1577 = vmatprep.subr.mxu0 0.0
    %1578 = vmatpush1.msra.mxu0 0.0
    %1579 = vmatprep.subr.mxu0 0.0
    %1580 = vmatpush1.msra.mxu0 0.0
    %1581 = vmatprep.subr.mxu0 0.0
    %1582 = vmatpush1.msra.mxu0 0.0
    %1583 = vmatprep.subr.mxu0 0.0
    %1584 = vmatpush1.msra.mxu0 0.0
    %1585 = vmatprep.subr.mxu0 0.0
    %1586 = vmatpush1.msra.mxu0 0.0
    %1587 = vmatprep.subr.mxu0 0.0
    %1588 = vmatpush1.msra.mxu0 0.0
    %1589 = vmatprep.subr.mxu0 0.0
    %1590 = vmatpush1.msra.mxu0 0.0
    %1591 = vmatprep.subr.mxu0 0.0
    %1592 = vmatpush1.msra.mxu0 %v434
    %1593 = vmatprep.subr.mxu0 0.0
    %1594 = vmatpush2.msra.mxu0 0.0
    %1595 = vmatprep.subr.mxu0 0.0
    %1596 = vmatpush2.msra.mxu0 0.0
    %1597 = vmatprep.subr.mxu0 0.0
    %1598 = vmatpush2.msra.mxu0 0.0
    %1599 = vmatprep.subr.mxu0 0.0
    %1600 = vmatpush2.msra.mxu0 0.0
    %1601 = vmatprep.subr.mxu0 0.0
    %1602 = vmatpush2.msra.mxu0 0.0
    %1603 = vmatprep.subr.mxu0 0.0
    %1604 = vmatpush2.msra.mxu0 0.0
    %1605 = vmatprep.subr.mxu0 0.0
    %1606 = vmatpush2.msra.mxu0 0.0
    %1607 = vmatprep.subr.mxu0 0.0
    %1608 = vmatpush2.msra.mxu0 0.0
    %1609 = vmatprep.subr.mxu0 0.0
    %1610 = vmatpush2.msra.mxu0 0.0
    %1611 = vmatprep.subr.mxu0 0.0
    %1612 = vmatpush2.msra.mxu0 0.0
    %1613 = vmatprep.subr.mxu0 0.0
    %1614 = vmatpush2.msra.mxu0 0.0
    %1615 = vmatprep.subr.mxu0 0.0
    %1616 = vmatpush2.msra.mxu0 0.0
    %1617 = vmatprep.subr.mxu0 0.0
    %1618 = vmatpush2.msra.mxu0 0.0
    %1619 = vmatprep.subr.mxu0 0.0
    %1620 = vmatpush2.msra.mxu0 0.0
    %1621 = vmatprep.subr.mxu0 0.0
    %1622 = vmatpush2.msra.mxu0 0.0
    %1623 = vmatprep.subr.mxu0 0.0
    %1624 = vmatpush2.msra.mxu0 0.0
    %1625 = vmatprep.mubr.f32.mxu0 0.0
    %1626 = vmatmul.mubr.f32.gmra.mxu0 %v1559
    %v1627 = vpop.f32.mrf.mxu0
    %v1628 = vadd.f32 0.0, %v1627
    %v1629 = vpop.f32.mrf.mxu0
    %1630 = vdwg.mxu0
    %v1632 = vsel %vm439, %v1119, 0
    %1634 = vmatprep.subr.mxu0 0.0
    %1635 = vmatpush1.msra.mxu0 0.0
    %1636 = vmatprep.subr.mxu0 0.0
    %1637 = vmatpush1.msra.mxu0 0.0
    %1638 = vmatprep.subr.mxu0 0.0
    %1639 = vmatpush1.msra.mxu0 0.0
    %1640 = vmatprep.subr.mxu0 0.0
    %1641 = vmatpush1.msra.mxu0 0.0
    %1642 = vmatprep.subr.mxu0 0.0
    %1643 = vmatpush1.msra.mxu0 0.0
    %1644 = vmatprep.subr.mxu0 0.0
    %1645 = vmatpush1.msra.mxu0 0.0
    %1646 = vmatprep.subr.mxu0 0.0
    %1647 = vmatpush1.msra.mxu0 0.0
    %1648 = vmatprep.subr.mxu0 0.0
    %1649 = vmatpush1.msra.mxu0 0.0
    %1650 = vmatprep.subr.mxu0 0.0
    %1651 = vmatpush1.msra.mxu0 0.0
    %1652 = vmatprep.subr.mxu0 0.0
    %1653 = vmatpush1.msra.mxu0 0.0
    %1654 = vmatprep.subr.mxu0 0.0
    %1655 = vmatpush1.msra.mxu0 0.0
    %1656 = vmatprep.subr.mxu0 0.0
    %1657 = vmatpush1.msra.mxu0 0.0
    %1658 = vmatprep.subr.mxu0 0.0
    %1659 = vmatpush1.msra.mxu0 0.0
    %1660 = vmatprep.subr.mxu0 0.0
    %1661 = vmatpush1.msra.mxu0 0.0
    %1662 = vmatprep.subr.mxu0 0.0
    %1663 = vmatpush1.msra.mxu0 0.0
    %1664 = vmatprep.subr.mxu0 0.0
    %1665 = vmatpush1.msra.mxu0 %v436
    %1666 = vmatprep.subr.mxu0 0.0
    %1667 = vmatpush2.msra.mxu0 0.0
    %1668 = vmatprep.subr.mxu0 0.0
    %1669 = vmatpush2.msra.mxu0 0.0
    %1670 = vmatprep.subr.mxu0 0.0
    %1671 = vmatpush2.msra.mxu0 0.0
    %1672 = vmatprep.subr.mxu0 0.0
    %1673 = vmatpush2.msra.mxu0 0.0
    %1674 = vmatprep.subr.mxu0 0.0
    %1675 = vmatpush2.msra.mxu0 0.0
    %1676 = vmatprep.subr.mxu0 0.0
    %1677 = vmatpush2.msra.mxu0 0.0
    %1678 = vmatprep.subr.mxu0 0.0
    %1679 = vmatpush2.msra.mxu0 0.0
    %1680 = vmatprep.subr.mxu0 0.0
    %1681 = vmatpush2.msra.mxu0 0.0
    %1682 = vmatprep.subr.mxu0 0.0
    %1683 = vmatpush2.msra.mxu0 0.0
    %1684 = vmatprep.subr.mxu0 0.0
    %1685 = vmatpush2.msra.mxu0 0.0
    %1686 = vmatprep.subr.mxu0 0.0
    %1687 = vmatpush2.msra.mxu0 0.0
    %1688 = vmatprep.subr.mxu0 0.0
    %1689 = vmatpush2.msra.mxu0 0.0
    %1690 = vmatprep.subr.mxu0 0.0
    %1691 = vmatpush2.msra.mxu0 0.0
    %1692 = vmatprep.subr.mxu0 0.0
    %1693 = vmatpush2.msra.mxu0 0.0
    %1694 = vmatprep.subr.mxu0 0.0
    %1695 = vmatpush2.msra.mxu0 0.0
    %1696 = vmatprep.subr.mxu0 0.0
    %1697 = vmatpush2.msra.mxu0 0.0
    %1698 = vmatprep.mubr.f32.mxu0 0.0
    %1699 = vmatmul.mubr.f32.gmra.mxu0 %v1632
    %v1700 = vpop.f32.mrf.mxu0
    %v1701 = vadd.f32 0.0, %v1700
    %v1702 = vpop.f32.mrf.mxu0
    %1703 = vdwg.mxu0
    %1706 = vrot.lane.b32.xlu0 %v1336, 8
    %v1707 = vpop.permute.xlu0 %1706
    %1708 = vrot.lane.b32.xlu0 %v1409, 8
    %v1709 = vpop.permute.xlu0 %1708
    %1714 = vrot.lane.b32.xlu0 %v1482, 16
    %v1715 = vpop.permute.xlu0 %1714
    %1716 = vrot.lane.b32.xlu0 %v1555, 16
    %v1717 = vpop.permute.xlu0 %1716
    %1722 = vrot.lane.b32.xlu0 %v1628, 24
    %v1723 = vpop.permute.xlu0 %1722
    %1724 = vrot.lane.b32.xlu0 %v1701, 24
    %v1725 = vpop.permute.xlu0 %1724
    %v1728 = vsel %vm439, %v1190, %v1707
    %v1729 = vsel %vm439, %v1263, %v1709
    %vm1730 = vcmask 130048
    %v1731 = vsel %vm1730, %v1728, %v1715
    %v1732 = vsel %vm1730, %v1729, %v1717
    %vm1733 = vcmask 195584
    %v1734 = vsel %vm1733, %v1731, %v1723
    %v1735 = vsel %vm1733, %v1732, %v1725
    %v1736 = vpack.c.bf16 %v1735, %v1734
    %v1737 = vld [vmem:[%s9] sm:$0xf]
    %v1738 = vld [vmem:[%s9 + $0x4] sm:$0xf]
    %v1739 = vld [vmem:[%s9 + $0x8] sm:$0xf]
    %v1740 = vld [vmem:[%s9 + $0xc] sm:$0xf]
    %v1741 = vld [vmem:[%s10] sm:$0x1]
    %v1743 = vlaneseq
    %v1744 = vshrl.u32 %v1743, 7
    %v1745 = vsub.s32 0, %v1744
    %v1746 = vrot.slane %v1741, %v1745
    %v1752 = vunpack.c.l.b16 %v1737
    %v1753 = vunpack.c.l.b16 %v1738
    %v1754 = vunpack.c.l.b16 %v1739
    %v1755 = vunpack.c.l.b16 %v1740
    %v1756 = vpack.c.b16 %v1753, %v1752
    %v1757 = vpack.c.b16 %v1755, %v1754
    %v1761 = vsel %vm202, %v1736, 0
    %1763 = vmatprep.subr.bf16.mxu0 0
    %1764 = vmatpush1.bf16.msra.mxu0 0
    %1765 = vmatprep.subr.bf16.mxu0 0
    %1766 = vmatpush1.bf16.msra.mxu0 0
    %1767 = vmatprep.subr.bf16.mxu0 0
    %1768 = vmatpush1.bf16.msra.mxu0 0
    %1769 = vmatprep.subr.bf16.mxu0 0
    %1770 = vmatpush1.bf16.msra.mxu0 0
    %1771 = vmatprep.subr.bf16.mxu0 0
    %1772 = vmatpush1.bf16.msra.mxu0 0
    %1773 = vmatprep.subr.bf16.mxu0 0
    %1774 = vmatpush1.bf16.msra.mxu0 0
    %1775 = vmatprep.subr.bf16.mxu0 0
    %1776 = vmatpush1.bf16.msra.mxu0 %v1757
    %1777 = vmatprep.subr.bf16.mxu0 0
    %1778 = vmatpush1.bf16.msra.mxu0 %v1756
    %1779 = vmatprep.subr.bf16.mxu0 0
    %1780 = vmatpush2.bf16.msra.mxu0 0
    %1781 = vmatprep.subr.bf16.mxu0 0
    %1782 = vmatpush2.bf16.msra.mxu0 0
    %1783 = vmatprep.subr.bf16.mxu0 0
    %1784 = vmatpush2.bf16.msra.mxu0 0
    %1785 = vmatprep.subr.bf16.mxu0 0
    %1786 = vmatpush2.bf16.msra.mxu0 0
    %1787 = vmatprep.subr.bf16.mxu0 0
    %1788 = vmatpush2.bf16.msra.mxu0 0
    %1789 = vmatprep.subr.bf16.mxu0 0
    %1790 = vmatpush2.bf16.msra.mxu0 0
    %1791 = vmatprep.subr.bf16.mxu0 0
    %1792 = vmatpush2.bf16.msra.mxu0 0
    %1793 = vmatprep.subr.bf16.mxu0 0
    %1794 = vmatpush2.bf16.msra.mxu0 0
    %1795 = vmatprep.mubr.bf16.mxu0 0
    %1796 = vmatmul.mubr.bf16.gmra.mxu0 %v1761
    %v1797 = vpop.f32.mrf.mxu0
    %v1798 = vadd.f32 %v1746, %v1797
    %v1799 = vpop.f32.mrf.mxu0
    %v1800 = vpop.f32.mrf.mxu0
    %v1801 = vadd.f32 %v1746, %v1800
    %v1802 = vpop.f32.mrf.mxu0
    %1803 = vdwg.mxu0
    %v1804 = vadd.f32 %v162, %v1798
    %v1805 = vadd.f32 %v163, %v1801
    %v1806 = vsel %vm202, %v1804, 0.0
    %1807 = vadd.xlane.f32.xlu0 %v1806
    %v1808 = vpop.xlane.xlu0 %1807
    %v1809 = vsel %vm202, %v1805, 0.0
    %1810 = vadd.xlane.f32.xlu0 %v1809
    %v1811 = vpop.xlane.xlu0 %1810
    %v1812 = vrcp.pop 32.0
    %v1813 = vmul.f32 %v1808, %v1812
    %v1814 = vmul.f32 %v1811, %v1812
    %v1815 = vsub.f32 %v1804, %v1813
    %v1816 = vsub.f32 %v1805, %v1814
    %v1817 = vmul.f32 %v1815, %v1815
    %v1818 = vmul.f32 %v1816, %v1816
    %v1819 = vsel %vm202, %v1817, 0.0
    %1820 = vadd.xlane.f32.xlu0 %v1819
    %v1821 = vpop.xlane.xlu0 %1820
    %v1822 = vsel %vm202, %v1818, 0.0
    %1823 = vadd.xlane.f32.xlu0 %v1822
    %v1824 = vpop.xlane.xlu0 %1823
    %v1825 = vmul.f32 %v1821, %v1812
    %v1826 = vmul.f32 %v1824, %v1812
    %v1827 = vadd.f32 %v1825, 1e-05
    %v1828 = vadd.f32 %v1826, 1e-05
    %v1829 = vrsqrt.pop %v1827
    %v1830 = vrsqrt.pop %v1828
    %v1831 = vmul.f32 %v1815, %v1829
    %v1832 = vmul.f32 %v1816, %v1830
    %v1833 = vld [vmem:[%s11] sm:$0x1]
    %v1835 = vlaneseq
    %v1836 = vshrl.u32 %v1835, 7
    %v1837 = vsub.s32 0, %v1836
    %v1838 = vrot.slane %v1833, %v1837
    %v1840 = vmul.f32 %v1831, %v1838
    %v1841 = vmul.f32 %v1832, %v1838
    %v1842 = vld [vmem:[%s12] sm:$0x1]
    %v1844 = vlaneseq
    %v1845 = vshrl.u32 %v1844, 7
    %v1846 = vsub.s32 0, %v1845
    %v1847 = vrot.slane %v1842, %v1846
    %v1849 = vadd.f32 %v1840, %v1847
    %v1850 = vadd.f32 %v1841, %v1847
    %1851 = vst.msk [vmem:[#allocation17] sm:$0xff] %vm202, %v1849
    %1852 = vst.msk [vmem:[#allocation17 + $0x8] sm:$0xff] %vm202, %v1850
    // Predicated region
    $region90: #{tpu_custom_call.1} parent=1 // pred_check
      _
    $region91: #{tpu_custom_call.1} parent=1 // pred_check_branch
      %1854 = sbr.rel (0) target = $region93
    $region92: #{tpu_custom_call.1} parent=1 // pred_region
      %s1856 = ssub.s32 256, 256
      %1857 = vsyncadd [#allocation4], %s1856
      %s1858 = sshll.u32 [#allocation17], 4
      %s1859 = int_to_ptr.vmem [resolvable:$true] %s1858
      %1864 = dma.vmem_to_hbm [thread:$0]  %s1859, 256, %s13, [#allocation4], 128, 128, 8
    $region93: #{tpu_custom_call.1} parent=1 // pred_fallthru
      _
    // Predicated region
    $region94: #{tpu_custom_call.1} parent=1 // pred_check
      _
    $region95: #{tpu_custom_call.1} parent=1 // pred_check_branch
      %1866 = sbr.rel (0) target = $region97
    $region96: #{tpu_custom_call.1} parent=1 // pred_region
      %1867 = dma.done [#allocation4], 256
    $region97: #{tpu_custom_call.1} parent=1 // pred_fallthru
      _
    %1868 = vsyncpa [#allocation3], 1
    %1869 = vsyncpa [#allocation6], 1
    %1870 = vsyncpa [#allocation9], 1
    %1871 = vsyncpa [#allocation12], 1
    %1872 = vsyncpa [#allocation15], 1
    %1873 = vsyncpa [#allocation4], 1

</llo_original>
